<compile_context>
chip_gen: v6e
topology: v6e:2x2x1
jax: 0.10.0
libtpu: 0.0.40
codegen_flags: <defaults>
</compile_context>

<pallas_src>
import functools

import jax
import jax.numpy as jnp
from jax.experimental import pallas as pl
from jax.experimental.pallas import tpu as pltpu


# --------------------------------------------------------------------------
# Fused kernel: conv1 -> BN+ReLU -> conv2 -> BN+ReLU -> maxpool(2)
# --------------------------------------------------------------------------
def _disk_down_kernel(x_ref, w1_ref, w2_ref, bn_ref, sel_ref, o_ref,
                      *, N, H, W, Cin, Cout):
    f32 = jnp.float32
    WC = W * Cout                       # conv-output lane width (128 here)
    NH = N * H
    Hh = H // 2
    inv_nhw = 1.0 / float(N * H * W)

    # Packed per-channel vectors, pre-tiled to the (w, c) lane layout.
    b1_row = bn_ref[0:1, :]
    b2_row = bn_ref[1:2, :]
    g_row = bn_ref[2:3, :]
    bt_row = bn_ref[3:4, :]

    # Per-image H-boundary masks (full lane width so the select is a plain VPU op).
    rid = jax.lax.broadcasted_iota(jnp.int32, (NH, WC), 0)
    h_in = rid % H
    not_top = h_in != 0                 # row h-1 exists inside the image
    not_bot = h_in != (H - 1)           # row h+1 exists inside the image

    def conv(x2d, w_ref, b_row):
        # One MXU matmul against dy-stacked banded weights; W-direction "same"
        # padding is already folded into the bands, H-direction padding is the
        # roll + boundary-mask below (no padded scratch, no zero-fill).
        p = jnp.dot(x2d, w_ref[...], preferred_element_type=f32)   # (NH, 3*WC)
        p0 = p[:, 0 * WC:1 * WC]        # kernel row dy=0 (needs input row h-1)
        p1 = p[:, 1 * WC:2 * WC]        # dy=1 (input row h)
        p2 = p[:, 2 * WC:3 * WC]        # dy=2 (input row h+1)
        up = jnp.where(not_top, pltpu.roll(p0, 1, axis=0), 0.0)
        dn = jnp.where(not_bot, pltpu.roll(p2, NH - 1, axis=0), 0.0)
        # Bias kept for exact parity with the PyTorch forward (BN cancels it).
        return p1 + up + dn + b_row

    def lane_group_sum(row):
        # (1, W*Cout): per-channel sum over the W lane groups, already broadcast
        # back to every lane of that channel.  Pure XLU rotates (log2(W) rolls).
        s = row
        k = WC // 2
        while k >= Cout:
            s = s + pltpu.roll(s, k, axis=1)
            k //= 2
        return s

    def bn_relu(acc):
        # PyTorch training-mode BatchNorm2d (biased var, eps=1e-5) + ReLU,
        # one-pass stats: var = E[x^2] - mean^2.
        mean = lane_group_sum(jnp.sum(acc, axis=0, keepdims=True)) * inv_nhw
        ex2 = lane_group_sum(jnp.sum(acc * acc, axis=0, keepdims=True)) * inv_nhw
        var = jnp.maximum(ex2 - mean * mean, 0.0)
        scale = g_row * jax.lax.rsqrt(var + 1e-5)       # folded BN affine (EUP)
        shift = bt_row - mean * scale
        return jnp.maximum(acc * scale + shift, 0.0)

    # ---- conv1 -> BN -> ReLU -> conv2 -> BN -> ReLU ----
    h1 = bn_relu(conv(x_ref[...], w1_ref, b1_row))      # (N*H, W*Cout)
    h2 = bn_relu(conv(h1, w2_ref, b2_row))              # (N*H, W*Cout)

    # ---- MaxPool2d(2) ----
    # H-pool via sublane regroup; W-pool + even-group lane compaction via two
    # tiny 0/1 selection matmuls (MXU), then one wide store to the output.
    hp = h2.reshape(N, Hh, 2, WC)
    ph = jnp.maximum(hp[:, :, 0, :], hp[:, :, 1, :]).reshape(N * Hh, WC)
    pooled = jnp.maximum(
        jnp.dot(ph, sel_ref[0], preferred_element_type=f32),
        jnp.dot(ph, sel_ref[1], preferred_element_type=f32))
    o_ref[...] = pooled                                  # (N*Hh, (W/2)*Cout)


# --------------------------------------------------------------------------
# Wrapper: layout plumbing + stacked banded conv weights + one pallas_call
# --------------------------------------------------------------------------
def _banded_conv_weights_stacked(w_hwio, W):
    """(3, 3, Cin, Cout) -> (W*Cin, 3*W*Cout) dy-column-stacked banded weights.

    Band dy: B[j*Cin+ci, o*Cout+co] = w[dy, j-o+1, ci, co] when |j-o| <= 1 else 0
    (the "same" zero padding along W is folded into the band structure).
    """
    K, _, Cin, Cout = w_hwio.shape
    j = jnp.arange(W)[:, None]            # input column
    o = jnp.arange(W)[None, :]            # output column
    mats = []
    for dy in range(K):
        m = jnp.zeros((W, Cin, W, Cout), w_hwio.dtype)
        for dx in range(K):
            sel = (j == o + dx - 1).astype(w_hwio.dtype)     # (W, W) band
            m = m + sel[:, None, :, None] * w_hwio[dy, dx][None, :, None, :]
        mats.append(m.reshape(W * Cin, W * Cout))
    return jnp.concatenate(mats, axis=1)                     # (W*Cin, 3*W*Cout)


def _pool_select_mats(W, Cout):
    """(2, W*Cout, (W/2)*Cout) 0/1 matrices picking even / odd W-groups."""
    WC, Wh = W * Cout, W // 2
    li = jnp.arange(WC)
    w_in, c_in = li // Cout, li % Cout
    lo = jnp.arange(Wh * Cout)
    k_out, c_out = lo // Cout, lo % Cout
    same_c = c_in[:, None] == c_out[None, :]
    even = ((w_in[:, None] == 2 * k_out[None, :]) & same_c).astype(jnp.float32)
    odd = ((w_in[:, None] == 2 * k_out[None, :] + 1) & same_c).astype(jnp.float32)
    return jnp.stack([even, odd], axis=0)


@jax.jit
def disk_down_forward(params, x_nchw):
    N, Cin, H, W = x_nchw.shape
    Cout = params["w1"].shape[0]
    # demo constraints: even spatial dims, power-of-2 W for the lane roll-fold
    assert H % 2 == 0 and W % 2 == 0 and (W & (W - 1)) == 0

    # NCHW -> lane layout (w, ci), rows = (n, h)
    x_lane = jnp.transpose(x_nchw, (0, 2, 3, 1)).reshape(N * H, W * Cin)

    w1 = jnp.transpose(params["w1"], (2, 3, 1, 0))           # OIHW -> HWIO
    w2 = jnp.transpose(params["w2"], (2, 3, 1, 0))
    w1s = _banded_conv_weights_stacked(w1, W)                 # (W*Cin,  3*W*Cout)
    w2s = _banded_conv_weights_stacked(w2, W)                 # (W*Cout, 3*W*Cout)
    sel = _pool_select_mats(W, Cout)                          # (2, W*Cout, Wh*Cout)

    def lane_tile(v):                                         # (C,) -> (W*C,)
        return jnp.tile(v, (W,))
    bn_pack = jnp.stack([lane_tile(params["b1"]), lane_tile(params["b2"]),
                         lane_tile(params["gamma"]), lane_tile(params["beta"])],
                        axis=0)                               # (4, W*Cout)

    WC, NH, Hh, Wh = W * Cout, N * H, H // 2, W // 2
    flops = (2 * NH * (W * Cin) * (3 * WC)          # conv1
             + 2 * NH * WC * (3 * WC)               # conv2
             + 2 * 2 * (N * Hh) * WC * (Wh * Cout)) # pool selection matmuls
    bytes_accessed = 4 * (x_lane.size + w1s.size + w2s.size + bn_pack.size
                          + sel.size + N * Hh * Wh * Cout)

    kern = functools.partial(_disk_down_kernel,
                             N=N, H=H, W=W, Cin=Cin, Cout=Cout)
    out = pl.pallas_call(
        kern,
        out_shape=jax.ShapeDtypeStruct((N * Hh, Wh * Cout), jnp.float32),
        cost_estimate=pl.CostEstimate(flops=flops, transcendentals=2 * WC,
                                      bytes_accessed=bytes_accessed),
    )(x_lane, w1s, w2s, bn_pack, sel)

    # (N*Hh, Wh*Cout) -> NCHW (pure layout plumbing on the HBM result)
    return jnp.transpose(out.reshape(N, Hh, Wh, Cout), (0, 3, 1, 2))


# --------------------------------------------------------------------------
# DiskDown parameters (deterministic init, shapes from the nn.Module)
# --------------------------------------------------------------------------
def init_disk_down_params(key, inc, outc, k=3):
    k1, k2, k3, k4 = jax.random.split(key, 4)
    bnd1 = 1.0 / float(inc * k * k) ** 0.5
    bnd2 = 1.0 / float(outc * k * k) ** 0.5
    return dict(
        w1=jax.random.uniform(k1, (outc, inc, k, k), jnp.float32, -bnd1, bnd1),
        b1=jax.random.uniform(k2, (outc,), jnp.float32, -bnd1, bnd1),
        w2=jax.random.uniform(k3, (outc, outc, k, k), jnp.float32, -bnd2, bnd2),
        b2=jax.random.uniform(k4, (outc,), jnp.float32, -bnd2, bnd2),
        gamma=jnp.ones((outc,), jnp.float32),   # BatchNorm2d default weight
        beta=jnp.zeros((outc,), jnp.float32),   # BatchNorm2d default bias
    )


# --------------------------------------------------------------------------
# Pure-JAX reference (faithful to the PyTorch module) for correctness check
# --------------------------------------------------------------------------
def _ref_forward(params, x_nchw):
    x = jnp.transpose(x_nchw, (0, 2, 3, 1))

    def conv(x, w, b):
        w_hwio = jnp.transpose(w, (2, 3, 1, 0))
        y = jax.lax.conv_general_dilated(
            x, w_hwio, (1, 1), "SAME",
            dimension_numbers=("NHWC", "HWIO", "NHWC"))
        return y + b[None, None, None, :]

    def bn_relu_ref(x, g, bt):
        m = jnp.mean(x, axis=(0, 1, 2), keepdims=True)
        v = jnp.mean(jnp.square(x - m), axis=(0, 1, 2), keepdims=True)
        y = (x - m) * jax.lax.rsqrt(v + 1e-5) * g + bt
        return jnp.maximum(y, 0.0)

    x = conv(x, params["w1"], params["b1"])
    x = bn_relu_ref(x, params["gamma"], params["beta"])
    x = conv(x, params["w2"], params["b2"])
    x = bn_relu_ref(x, params["gamma"], params["beta"])
    x = jax.lax.reduce_window(x, -jnp.inf, jax.lax.max,
                              (1, 2, 2, 1), (1, 2, 2, 1), "VALID")
    return jnp.transpose(x, (0, 3, 1, 2))


if __name__ == "__main__":
    # TODO(synk): BatchNorm running_mean/running_var buffer updates (a training
    # side effect of the PyTorch module) are not produced; only the forward
    # output (training-mode batch statistics) is computed.
    inc, outc = 4, 8
    key = jax.random.PRNGKey(0)
    kp, kx = jax.random.split(key)
    params = init_disk_down_params(kp, inc, outc)
    x = jax.random.normal(kx, (2, inc, 16, 16), jnp.float32)   # NCHW input

    out = jax.block_until_ready(disk_down_forward(params, x))
    ref = jax.block_until_ready(_ref_forward(params, x))

    assert out.shape == (2, outc, 8, 8), out.shape
    err = float(jnp.max(jnp.abs(out - ref)))
    assert jnp.allclose(out, ref, rtol=1e-4, atol=1e-4), err
    print("KERNEL_OK")
</pallas_src>

<mosaic_0001>
module attributes {stable_mosaic.version = 11 : i64} {
  func.func @_disk_down_kernel(%arg0: memref<32x64xf32, #tpu.memory_space<vmem>>, %arg1: memref<64x384xf32, #tpu.memory_space<vmem>>, %arg2: memref<128x384xf32, #tpu.memory_space<vmem>>, %arg3: memref<4x128xf32, #tpu.memory_space<vmem>>, %arg4: memref<2x128x64xf32, #tpu.memory_space<vmem>>, %arg5: memref<16x64xf32, #tpu.memory_space<vmem>>) attributes {dimension_semantics = [], scalar_prefetch = 0 : i64, scratch_operands = 0 : i64, tpu.core_type = #tpu.core_type<tc>} {
    %c0 = arith.constant 0 : index
    %c0_0 = arith.constant 0 : index
    %0 = vector.load %arg3[%c0, %c0_0] : memref<4x128xf32, #tpu.memory_space<vmem>>, vector<1x128xf32>
    %c1 = arith.constant 1 : index
    %c0_1 = arith.constant 0 : index
    %1 = vector.load %arg3[%c1, %c0_1] : memref<4x128xf32, #tpu.memory_space<vmem>>, vector<1x128xf32>
    %c2 = arith.constant 2 : index
    %c0_2 = arith.constant 0 : index
    %2 = vector.load %arg3[%c2, %c0_2] : memref<4x128xf32, #tpu.memory_space<vmem>>, vector<1x128xf32>
    %c3 = arith.constant 3 : index
    %c0_3 = arith.constant 0 : index
    %3 = vector.load %arg3[%c3, %c0_3] : memref<4x128xf32, #tpu.memory_space<vmem>>, vector<1x128xf32>
    %4 = tpu.iota {dimensions = array<i32: 0>} : vector<32x128xi32>
    %c16_i32 = arith.constant 16 : i32
    %c0_i32 = arith.constant 0 : i32
    %5 = arith.cmpi eq, %c16_i32, %c0_i32 : i32
    %c1_i32 = arith.constant 1 : i32
    %6 = arith.select %5, %c1_i32, %c16_i32 : i32
    %7 = vector.broadcast %6 : i32 to vector<32x128xi32>
    %8 = arith.remsi %4, %7 : vector<32x128xi32>
    %c0_i32_4 = arith.constant 0 : i32
    %9 = vector.broadcast %c0_i32_4 : i32 to vector<32x128xi32>
    %10 = arith.cmpi ne, %8, %9 : vector<32x128xi32>
    %c0_i32_5 = arith.constant 0 : i32
    %11 = vector.broadcast %c0_i32_5 : i32 to vector<32x128xi32>
    %12 = arith.cmpi slt, %8, %11 : vector<32x128xi32>
    %c0_i32_6 = arith.constant 0 : i32
    %13 = arith.cmpi slt, %6, %c0_i32_6 : i32
    %14 = vector.broadcast %13 : i1 to vector<32x128xi1>
    %15 = vector.broadcast %14 : vector<32x128xi1> to vector<32x128xi1>
    %16 = arith.xori %12, %15 : vector<32x128xi1>
    %17 = arith.andi %16, %10 : vector<32x128xi1>
    %18 = vector.broadcast %6 : i32 to vector<32x128xi32>
    %19 = arith.addi %8, %18 : vector<32x128xi32>
    %20 = arith.select %17, %19, %8 : vector<32x128xi1>, vector<32x128xi32>
    %c0_i32_7 = arith.constant 0 : i32
    %21 = vector.broadcast %c0_i32_7 : i32 to vector<32x128xi32>
    %22 = arith.cmpi ne, %20, %21 : vector<32x128xi32>
    %c15_i32 = arith.constant 15 : i32
    %23 = vector.broadcast %c15_i32 : i32 to vector<32x128xi32>
    %24 = arith.cmpi ne, %20, %23 : vector<32x128xi32>
    %c0_8 = arith.constant 0 : index
    %c0_9 = arith.constant 0 : index
    %25 = vector.load %arg0[%c0_8, %c0_9] : memref<32x64xf32, #tpu.memory_space<vmem>>, vector<32x64xf32>
    %c0_10 = arith.constant 0 : index
    %c0_11 = arith.constant 0 : index
    %26 = vector.load %arg1[%c0_10, %c0_11] : memref<64x384xf32, #tpu.memory_space<vmem>>, vector<64x384xf32>
    %cst = arith.constant dense<0.000000e+00> : vector<32x384xf32>
    %27 = tpu.matmul %25, %26, %cst {dimension_numbers = #tpu.dot_dimension_numbers<[1], [0], [0], [1], [0, 0, 1, 1], [], []>} : vector<32x64xf32>, vector<64x384xf32>, vector<32x384xf32> -> vector<32x384xf32>
    %28 = vector.extract_strided_slice %27 {offsets = [0, 0], sizes = [32, 128], strides = [1, 1]} : vector<32x384xf32> to vector<32x128xf32>
    %29 = vector.extract_strided_slice %27 {offsets = [0, 128], sizes = [32, 128], strides = [1, 1]} : vector<32x384xf32> to vector<32x128xf32>
    %30 = vector.extract_strided_slice %27 {offsets = [0, 256], sizes = [32, 128], strides = [1, 1]} : vector<32x384xf32> to vector<32x128xf32>
    %c1_i32_12 = arith.constant 1 : i32
    %31 = tpu.dynamic_rotate %28 by %c1_i32_12 dim 0 : vector<32x128xf32>, i32 -> vector<32x128xf32>
    %cst_13 = arith.constant 0.000000e+00 : f32
    %32 = vector.broadcast %cst_13 : f32 to vector<32x128xf32>
    %33 = arith.select %22, %31, %32 : vector<32x128xi1>, vector<32x128xf32>
    %c31_i32 = arith.constant 31 : i32
    %34 = tpu.dynamic_rotate %30 by %c31_i32 dim 0 : vector<32x128xf32>, i32 -> vector<32x128xf32>
    %cst_14 = arith.constant 0.000000e+00 : f32
    %35 = vector.broadcast %cst_14 : f32 to vector<32x128xf32>
    %36 = arith.select %24, %34, %35 : vector<32x128xi1>, vector<32x128xf32>
    %37 = arith.addf %29, %33 : vector<32x128xf32>
    %38 = arith.addf %37, %36 : vector<32x128xf32>
    %39 = vector.broadcast %0 : vector<1x128xf32> to vector<32x128xf32>
    %40 = arith.addf %38, %39 : vector<32x128xf32>
    %cst_15 = arith.constant dense<0.000000e+00> : vector<128xf32>
    %41 = vector.multi_reduction <add>, %40, %cst_15 [0] : vector<32x128xf32> to vector<128xf32>
    %42 = vector.shape_cast %41 : vector<128xf32> to vector<1x128xf32>
    %c64_i32 = arith.constant 64 : i32
    %43 = tpu.dynamic_rotate %42 by %c64_i32 dim 1 : vector<1x128xf32>, i32 -> vector<1x128xf32>
    %44 = arith.addf %42, %43 : vector<1x128xf32>
    %c32_i32 = arith.constant 32 : i32
    %45 = tpu.dynamic_rotate %44 by %c32_i32 dim 1 : vector<1x128xf32>, i32 -> vector<1x128xf32>
    %46 = arith.addf %44, %45 : vector<1x128xf32>
    %c16_i32_16 = arith.constant 16 : i32
    %47 = tpu.dynamic_rotate %46 by %c16_i32_16 dim 1 : vector<1x128xf32>, i32 -> vector<1x128xf32>
    %48 = arith.addf %46, %47 : vector<1x128xf32>
    %c8_i32 = arith.constant 8 : i32
    %49 = tpu.dynamic_rotate %48 by %c8_i32 dim 1 : vector<1x128xf32>, i32 -> vector<1x128xf32>
    %50 = arith.addf %48, %49 : vector<1x128xf32>
    %cst_17 = arith.constant 0.001953125 : f32
    %51 = vector.broadcast %cst_17 : f32 to vector<1x128xf32>
    %52 = arith.mulf %50, %51 : vector<1x128xf32>
    %53 = arith.mulf %40, %40 : vector<32x128xf32>
    %cst_18 = arith.constant dense<0.000000e+00> : vector<128xf32>
    %54 = vector.multi_reduction <add>, %53, %cst_18 [0] : vector<32x128xf32> to vector<128xf32>
    %55 = vector.shape_cast %54 : vector<128xf32> to vector<1x128xf32>
    %c64_i32_19 = arith.constant 64 : i32
    %56 = tpu.dynamic_rotate %55 by %c64_i32_19 dim 1 : vector<1x128xf32>, i32 -> vector<1x128xf32>
    %57 = arith.addf %55, %56 : vector<1x128xf32>
    %c32_i32_20 = arith.constant 32 : i32
    %58 = tpu.dynamic_rotate %57 by %c32_i32_20 dim 1 : vector<1x128xf32>, i32 -> vector<1x128xf32>
    %59 = arith.addf %57, %58 : vector<1x128xf32>
    %c16_i32_21 = arith.constant 16 : i32
    %60 = tpu.dynamic_rotate %59 by %c16_i32_21 dim 1 : vector<1x128xf32>, i32 -> vector<1x128xf32>
    %61 = arith.addf %59, %60 : vector<1x128xf32>
    %c8_i32_22 = arith.constant 8 : i32
    %62 = tpu.dynamic_rotate %61 by %c8_i32_22 dim 1 : vector<1x128xf32>, i32 -> vector<1x128xf32>
    %63 = arith.addf %61, %62 : vector<1x128xf32>
    %cst_23 = arith.constant 0.001953125 : f32
    %64 = vector.broadcast %cst_23 : f32 to vector<1x128xf32>
    %65 = arith.mulf %63, %64 : vector<1x128xf32>
    %66 = arith.mulf %52, %52 : vector<1x128xf32>
    %67 = arith.subf %65, %66 : vector<1x128xf32>
    %cst_24 = arith.constant 0.000000e+00 : f32
    %68 = vector.broadcast %cst_24 : f32 to vector<1x128xf32>
    %69 = arith.maximumf %67, %68 : vector<1x128xf32>
    %cst_25 = arith.constant 9.99999974E-6 : f32
    %70 = vector.broadcast %cst_25 : f32 to vector<1x128xf32>
    %71 = arith.addf %69, %70 : vector<1x128xf32>
    %72 = math.rsqrt %71 : vector<1x128xf32>
    %73 = arith.mulf %2, %72 : vector<1x128xf32>
    %74 = arith.mulf %52, %73 : vector<1x128xf32>
    %75 = arith.subf %3, %74 : vector<1x128xf32>
    %76 = vector.broadcast %73 : vector<1x128xf32> to vector<32x128xf32>
    %77 = arith.mulf %40, %76 : vector<32x128xf32>
    %78 = vector.broadcast %75 : vector<1x128xf32> to vector<32x128xf32>
    %79 = arith.addf %77, %78 : vector<32x128xf32>
    %cst_26 = arith.constant 0.000000e+00 : f32
    %80 = vector.broadcast %cst_26 : f32 to vector<32x128xf32>
    %81 = arith.maximumf %79, %80 : vector<32x128xf32>
    %c0_27 = arith.constant 0 : index
    %c0_28 = arith.constant 0 : index
    %82 = vector.load %arg2[%c0_27, %c0_28] : memref<128x384xf32, #tpu.memory_space<vmem>>, vector<128x384xf32>
    %cst_29 = arith.constant dense<0.000000e+00> : vector<32x384xf32>
    %83 = tpu.matmul %81, %82, %cst_29 {dimension_numbers = #tpu.dot_dimension_numbers<[1], [0], [0], [1], [0, 0, 1, 1], [], []>} : vector<32x128xf32>, vector<128x384xf32>, vector<32x384xf32> -> vector<32x384xf32>
    %84 = vector.extract_strided_slice %83 {offsets = [0, 0], sizes = [32, 128], strides = [1, 1]} : vector<32x384xf32> to vector<32x128xf32>
    %85 = vector.extract_strided_slice %83 {offsets = [0, 128], sizes = [32, 128], strides = [1, 1]} : vector<32x384xf32> to vector<32x128xf32>
    %86 = vector.extract_strided_slice %83 {offsets = [0, 256], sizes = [32, 128], strides = [1, 1]} : vector<32x384xf32> to vector<32x128xf32>
    %c1_i32_30 = arith.constant 1 : i32
    %87 = tpu.dynamic_rotate %84 by %c1_i32_30 dim 0 : vector<32x128xf32>, i32 -> vector<32x128xf32>
    %cst_31 = arith.constant 0.000000e+00 : f32
    %88 = vector.broadcast %cst_31 : f32 to vector<32x128xf32>
    %89 = arith.select %22, %87, %88 : vector<32x128xi1>, vector<32x128xf32>
    %c31_i32_32 = arith.constant 31 : i32
    %90 = tpu.dynamic_rotate %86 by %c31_i32_32 dim 0 : vector<32x128xf32>, i32 -> vector<32x128xf32>
    %cst_33 = arith.constant 0.000000e+00 : f32
    %91 = vector.broadcast %cst_33 : f32 to vector<32x128xf32>
    %92 = arith.select %24, %90, %91 : vector<32x128xi1>, vector<32x128xf32>
    %93 = arith.addf %85, %89 : vector<32x128xf32>
    %94 = arith.addf %93, %92 : vector<32x128xf32>
    %95 = vector.broadcast %1 : vector<1x128xf32> to vector<32x128xf32>
    %96 = arith.addf %94, %95 : vector<32x128xf32>
    %cst_34 = arith.constant dense<0.000000e+00> : vector<128xf32>
    %97 = vector.multi_reduction <add>, %96, %cst_34 [0] : vector<32x128xf32> to vector<128xf32>
    %98 = vector.shape_cast %97 : vector<128xf32> to vector<1x128xf32>
    %c64_i32_35 = arith.constant 64 : i32
    %99 = tpu.dynamic_rotate %98 by %c64_i32_35 dim 1 : vector<1x128xf32>, i32 -> vector<1x128xf32>
    %100 = arith.addf %98, %99 : vector<1x128xf32>
    %c32_i32_36 = arith.constant 32 : i32
    %101 = tpu.dynamic_rotate %100 by %c32_i32_36 dim 1 : vector<1x128xf32>, i32 -> vector<1x128xf32>
    %102 = arith.addf %100, %101 : vector<1x128xf32>
    %c16_i32_37 = arith.constant 16 : i32
    %103 = tpu.dynamic_rotate %102 by %c16_i32_37 dim 1 : vector<1x128xf32>, i32 -> vector<1x128xf32>
    %104 = arith.addf %102, %103 : vector<1x128xf32>
    %c8_i32_38 = arith.constant 8 : i32
    %105 = tpu.dynamic_rotate %104 by %c8_i32_38 dim 1 : vector<1x128xf32>, i32 -> vector<1x128xf32>
    %106 = arith.addf %104, %105 : vector<1x128xf32>
    %cst_39 = arith.constant 0.001953125 : f32
    %107 = vector.broadcast %cst_39 : f32 to vector<1x128xf32>
    %108 = arith.mulf %106, %107 : vector<1x128xf32>
    %109 = arith.mulf %96, %96 : vector<32x128xf32>
    %cst_40 = arith.constant dense<0.000000e+00> : vector<128xf32>
    %110 = vector.multi_reduction <add>, %109, %cst_40 [0] : vector<32x128xf32> to vector<128xf32>
    %111 = vector.shape_cast %110 : vector<128xf32> to vector<1x128xf32>
    %c64_i32_41 = arith.constant 64 : i32
    %112 = tpu.dynamic_rotate %111 by %c64_i32_41 dim 1 : vector<1x128xf32>, i32 -> vector<1x128xf32>
    %113 = arith.addf %111, %112 : vector<1x128xf32>
    %c32_i32_42 = arith.constant 32 : i32
    %114 = tpu.dynamic_rotate %113 by %c32_i32_42 dim 1 : vector<1x128xf32>, i32 -> vector<1x128xf32>
    %115 = arith.addf %113, %114 : vector<1x128xf32>
    %c16_i32_43 = arith.constant 16 : i32
    %116 = tpu.dynamic_rotate %115 by %c16_i32_43 dim 1 : vector<1x128xf32>, i32 -> vector<1x128xf32>
    %117 = arith.addf %115, %116 : vector<1x128xf32>
    %c8_i32_44 = arith.constant 8 : i32
    %118 = tpu.dynamic_rotate %117 by %c8_i32_44 dim 1 : vector<1x128xf32>, i32 -> vector<1x128xf32>
    %119 = arith.addf %117, %118 : vector<1x128xf32>
    %cst_45 = arith.constant 0.001953125 : f32
    %120 = vector.broadcast %cst_45 : f32 to vector<1x128xf32>
    %121 = arith.mulf %119, %120 : vector<1x128xf32>
    %122 = arith.mulf %108, %108 : vector<1x128xf32>
    %123 = arith.subf %121, %122 : vector<1x128xf32>
    %cst_46 = arith.constant 0.000000e+00 : f32
    %124 = vector.broadcast %cst_46 : f32 to vector<1x128xf32>
    %125 = arith.maximumf %123, %124 : vector<1x128xf32>
    %cst_47 = arith.constant 9.99999974E-6 : f32
    %126 = vector.broadcast %cst_47 : f32 to vector<1x128xf32>
    %127 = arith.addf %125, %126 : vector<1x128xf32>
    %128 = math.rsqrt %127 : vector<1x128xf32>
    %129 = arith.mulf %2, %128 : vector<1x128xf32>
    %130 = arith.mulf %108, %129 : vector<1x128xf32>
    %131 = arith.subf %3, %130 : vector<1x128xf32>
    %132 = vector.broadcast %129 : vector<1x128xf32> to vector<32x128xf32>
    %133 = arith.mulf %96, %132 : vector<32x128xf32>
    %134 = vector.broadcast %131 : vector<1x128xf32> to vector<32x128xf32>
    %135 = arith.addf %133, %134 : vector<32x128xf32>
    %cst_48 = arith.constant 0.000000e+00 : f32
    %136 = vector.broadcast %cst_48 : f32 to vector<32x128xf32>
    %137 = arith.maximumf %135, %136 : vector<32x128xf32>
    %138 = vector.shape_cast %137 : vector<32x128xf32> to vector<2x8x2x128xf32>
    %139 = vector.extract_strided_slice %138 {offsets = [0, 0, 0, 0], sizes = [2, 8, 1, 128], strides = [1, 1, 1, 1]} : vector<2x8x2x128xf32> to vector<2x8x1x128xf32>
    %140 = vector.shape_cast %139 : vector<2x8x1x128xf32> to vector<2x8x128xf32>
    %141 = vector.extract_strided_slice %138 {offsets = [0, 0, 1, 0], sizes = [2, 8, 1, 128], strides = [1, 1, 1, 1]} : vector<2x8x2x128xf32> to vector<2x8x1x128xf32>
    %142 = vector.shape_cast %141 : vector<2x8x1x128xf32> to vector<2x8x128xf32>
    %143 = arith.maximumf %140, %142 : vector<2x8x128xf32>
    %144 = vector.shape_cast %143 : vector<2x8x128xf32> to vector<16x128xf32>
    %c0_49 = arith.constant 0 : index
    %c0_50 = arith.constant 0 : index
    %c0_51 = arith.constant 0 : index
    %145 = vector.load %arg4[%c0_49, %c0_50, %c0_51] : memref<2x128x64xf32, #tpu.memory_space<vmem>>, vector<1x128x64xf32>
    %146 = vector.shape_cast %145 : vector<1x128x64xf32> to vector<128x64xf32>
    %cst_52 = arith.constant dense<0.000000e+00> : vector<16x64xf32>
    %147 = tpu.matmul %144, %146, %cst_52 {dimension_numbers = #tpu.dot_dimension_numbers<[1], [0], [0], [1], [0, 0, 1, 1], [], []>} : vector<16x128xf32>, vector<128x64xf32>, vector<16x64xf32> -> vector<16x64xf32>
    %c1_53 = arith.constant 1 : index
    %c0_54 = arith.constant 0 : index
    %c0_55 = arith.constant 0 : index
    %148 = vector.load %arg4[%c1_53, %c0_54, %c0_55] : memref<2x128x64xf32, #tpu.memory_space<vmem>>, vector<1x128x64xf32>
    %149 = vector.shape_cast %148 : vector<1x128x64xf32> to vector<128x64xf32>
    %cst_56 = arith.constant dense<0.000000e+00> : vector<16x64xf32>
    %150 = tpu.matmul %144, %149, %cst_56 {dimension_numbers = #tpu.dot_dimension_numbers<[1], [0], [0], [1], [0, 0, 1, 1], [], []>} : vector<16x128xf32>, vector<128x64xf32>, vector<16x64xf32> -> vector<16x64xf32>
    %151 = arith.maximumf %147, %150 : vector<16x64xf32>
    %c0_57 = arith.constant 0 : index
    %c0_58 = arith.constant 0 : index
    %152 = vector.load %arg5[%c0_57, %c0_58] : memref<16x64xf32, #tpu.memory_space<vmem>>, vector<16x64xf32>
    tpu.vector_store %arg5[%c0_57, %c0_58], %151 {strides = array<i32>} : memref<16x64xf32, #tpu.memory_space<vmem>>, vector<16x64xf32>,
    return
  }
}

</mosaic_0001>

<llo_original>
// kernel: tile.23
$region0: #{tile.23}
  #allocation0 [shape = 's32[1]{0}', space=sflag, size = 0x4, scoped, tag = 'scoped memory for tile.23']
  %s0 = inlined_call_operand.vmem [shape: f32[8], index: 0, kind: input, shape index: {}]
  %s1 = inlined_call_operand.vmem [shape: f32[16,8], index: 1, kind: output, shape index: {}]
  // Predicated region
  $region2: #{tile.23} parent=0 // pred_check
    _
  $region3: #{tile.23} parent=0 // pred_check_branch
    %3 = sbr.rel (0) target = $region5
  $region4: #{tile.23} parent=0 // pred_region
    _
  $region5: #{tile.23} parent=0 // pred_fallthru
    _
  %v4 = vld [vmem:[%s0] ss:$0 sm:$0xff]
  %5 = vst [vmem:[%s1] sm:$0xff] %v4
  %s6 = scalar_lea.vmem %s1, 8
  %7 = vst [vmem:[%s6] sm:$0xff] %v4

// kernel: tile.36
$region0: #{tile.36}
  %s0 = inlined_call_operand.vmem [shape: f32[16,8], index: 0, kind: input, shape index: {}]
  %s1 = inlined_call_operand.vmem [shape: f32[1,128], index: 1, kind: output, shape index: {}]
  $region1: #{tile.36} parent=0
    #allocation0 [shape = 'u8[4096]{0}', space=vmem, size = 0x1000, scoped, tag = 'scoped mem for output reshape']
    %v2 = vld [vmem:[%s0] sm:$0x1]
    %vm3 = vcmask 64512
    %4 = vst.msk [vmem:[#allocation0] sm:$0x1] %vm3, %v2
    %s5 = scalar_lea.vmem %s0, 15
    %v6 = vld [vmem:[%s5] sm:$0x1]
    %7 = vrot.lane.b32.xlu0 %v6, 120
    %v8 = vpop.permute.xlu0 %7
    %vm9 = vcmask 1048512
    %10 = vst.msk [vmem:[#allocation0] sm:$0x1] %vm9, %v8
    %s11 = scalar_lea.vmem %s0, 14
    %v12 = vld [vmem:[%s11] sm:$0x1]
    %13 = vrot.lane.b32.xlu0 %v12, 112
    %v14 = vpop.permute.xlu0 %13
    %vm15 = vcmask 982912
    %16 = vst.msk [vmem:[#allocation0] sm:$0x1] %vm15, %v14
    %s17 = scalar_lea.vmem %s0, 13
    %v18 = vld [vmem:[%s17] sm:$0x1]
    %19 = vrot.lane.b32.xlu0 %v18, 104
    %v20 = vpop.permute.xlu0 %19
    %vm21 = vcmask 917312
    %22 = vst.msk [vmem:[#allocation0] sm:$0x1] %vm21, %v20
    %s23 = scalar_lea.vmem %s0, 12
    %v24 = vld [vmem:[%s23] sm:$0x1]
    %25 = vrot.lane.b32.xlu0 %v24, 96
    %v26 = vpop.permute.xlu0 %25
    %vm27 = vcmask 851712
    %28 = vst.msk [vmem:[#allocation0] sm:$0x1] %vm27, %v26
    %s29 = scalar_lea.vmem %s0, 11
    %v30 = vld [vmem:[%s29] sm:$0x1]
    %31 = vrot.lane.b32.xlu0 %v30, 88
    %v32 = vpop.permute.xlu0 %31
    %vm33 = vcmask 786112
    %34 = vst.msk [vmem:[#allocation0] sm:$0x1] %vm33, %v32
    %s35 = scalar_lea.vmem %s0, 10
    %v36 = vld [vmem:[%s35] sm:$0x1]
    %37 = vrot.lane.b32.xlu0 %v36, 80
    %v38 = vpop.permute.xlu0 %37
    %vm39 = vcmask 720512
    %40 = vst.msk [vmem:[#allocation0] sm:$0x1] %vm39, %v38
    %s41 = scalar_lea.vmem %s0, 9
    %v42 = vld [vmem:[%s41] sm:$0x1]
    %43 = vrot.lane.b32.xlu0 %v42, 72
    %v44 = vpop.permute.xlu0 %43
    %vm45 = vcmask 654912
    %46 = vst.msk [vmem:[#allocation0] sm:$0x1] %vm45, %v44
    %s47 = scalar_lea.vmem %s0, 8
    %v48 = vld [vmem:[%s47] sm:$0x1]
    %49 = vrot.lane.b32.xlu0 %v48, 64
    %v50 = vpop.permute.xlu0 %49
    %vm51 = vcmask 589312
    %52 = vst.msk [vmem:[#allocation0] sm:$0x1] %vm51, %v50
    %s53 = scalar_lea.vmem %s0, 7
    %v54 = vld [vmem:[%s53] sm:$0x1]
    %55 = vrot.lane.b32.xlu0 %v54, 56
    %v56 = vpop.permute.xlu0 %55
    %vm57 = vcmask 523712
    %58 = vst.msk [vmem:[#allocation0] sm:$0x1] %vm57, %v56
    %s59 = scalar_lea.vmem %s0, 6
    %v60 = vld [vmem:[%s59] sm:$0x1]
    %61 = vrot.lane.b32.xlu0 %v60, 48
    %v62 = vpop.permute.xlu0 %61
    %vm63 = vcmask 458112
    %64 = vst.msk [vmem:[#allocation0] sm:$0x1] %vm63, %v62
    %s65 = scalar_lea.vmem %s0, 5
    %v66 = vld [vmem:[%s65] sm:$0x1]
    %67 = vrot.lane.b32.xlu0 %v66, 40
    %v68 = vpop.permute.xlu0 %67
    %vm69 = vcmask 392512
    %70 = vst.msk [vmem:[#allocation0] sm:$0x1] %vm69, %v68
    %s71 = scalar_lea.vmem %s0, 4
    %v72 = vld [vmem:[%s71] sm:$0x1]
    %73 = vrot.lane.b32.xlu0 %v72, 32
    %v74 = vpop.permute.xlu0 %73
    %vm75 = vcmask 326912
    %76 = vst.msk [vmem:[#allocation0] sm:$0x1] %vm75, %v74
    %s77 = scalar_lea.vmem %s0, 3
    %v78 = vld [vmem:[%s77] sm:$0x1]
    %79 = vrot.lane.b32.xlu0 %v78, 24
    %v80 = vpop.permute.xlu0 %79
    %vm81 = vcmask 261312
    %82 = vst.msk [vmem:[#allocation0] sm:$0x1] %vm81, %v80
    %s83 = scalar_lea.vmem %s0, 2
    %v84 = vld [vmem:[%s83] sm:$0x1]
    %85 = vrot.lane.b32.xlu0 %v84, 16
    %v86 = vpop.permute.xlu0 %85
    %vm87 = vcmask 195712
    %88 = vst.msk [vmem:[#allocation0] sm:$0x1] %vm87, %v86
    %s89 = scalar_lea.vmem %s0, 1
    %v90 = vld [vmem:[%s89] sm:$0x1]
    %91 = vrot.lane.b32.xlu0 %v90, 8
    %v92 = vpop.permute.xlu0 %91
    %vm93 = vcmask 130112
    %94 = vst.msk [vmem:[#allocation0] sm:$0x1] %vm93, %v92
    %s96 = sshll.u32 1, 1
    %s97 = ssub.s32 %s96, 1
    %v99 = vld [vmem:[#allocation0] sm:%s97]
    %s100 = sshll.u32 1, 1
    %s101 = ssub.s32 %s100, 1
    %102 = vst [vmem:[%s1] sm:%s101] %v99

// kernel: disk_down_forward.1
$region0: #{disk_down_forward.1}
  #allocation0 [shape = 'u32[]', space=smem, size = 0x4, offset = 0x4, fixed_abs, tag = 'smem constant byte address 0x4 - core index']
  #allocation1 [shape = 'u32[144,128]{1,0:T(1,128)}', space=vmem, size = 0x12000, scoped, tag = 'internal scratch']
  %s0 = inlined_call_operand.vmem [shape: f32[32,64], index: 0, kind: input, shape index: {}]
  %s1 = inlined_call_operand.vmem [shape: f32[64,384], index: 1, kind: input, shape index: {}]
  %s2 = inlined_call_operand.vmem [shape: f32[128,384], index: 2, kind: input, shape index: {}]
  %s3 = inlined_call_operand.vmem [shape: f32[4,128], index: 3, kind: input, shape index: {}]
  %s4 = inlined_call_operand.vmem [shape: f32[2,128,64], index: 4, kind: input, shape index: {}]
  %s5 = inlined_call_operand.vmem [shape: f32[16,64], index: 5, kind: output, shape index: {}]
  %s6 = sld [smem:[#allocation0]]
  $region30: #{disk_down_forward.1} parent=0
    _
  %s8 = ssub.s32 1, %s6
  %s9 = scalar_select 0, %s8, %s6
  // Predicated region
  $region2: #{disk_down_forward.1} parent=0 // pred_check
    _
  $region3: #{disk_down_forward.1} parent=0 // pred_check_branch
    %11 = sbr.rel (0) target = $region5
  $region4: #{disk_down_forward.1} parent=0 // pred_region
    _
  $region5: #{disk_down_forward.1} parent=0 // pred_fallthru
    _
  // Predicated region
  $region6: #{disk_down_forward.1} parent=0 // pred_check
    _
  $region7: #{disk_down_forward.1} parent=0 // pred_check_branch
    %13 = sbr.rel (0) target = $region9
  $region8: #{disk_down_forward.1} parent=0 // pred_region
    _
  $region9: #{disk_down_forward.1} parent=0 // pred_fallthru
    _
  // Predicated region
  $region10: #{disk_down_forward.1} parent=0 // pred_check
    _
  $region11: #{disk_down_forward.1} parent=0 // pred_check_branch
    %15 = sbr.rel (0) target = $region13
  $region12: #{disk_down_forward.1} parent=0 // pred_region
    _
  $region13: #{disk_down_forward.1} parent=0 // pred_fallthru
    _
  // Predicated region
  $region14: #{disk_down_forward.1} parent=0 // pred_check
    _
  $region15: #{disk_down_forward.1} parent=0 // pred_check_branch
    %17 = sbr.rel (0) target = $region17
  $region16: #{disk_down_forward.1} parent=0 // pred_region
    _
  $region17: #{disk_down_forward.1} parent=0 // pred_fallthru
    _
  // Predicated region
  $region18: #{disk_down_forward.1} parent=0 // pred_check
    _
  $region19: #{disk_down_forward.1} parent=0 // pred_check_branch
    %19 = sbr.rel (0) target = $region21
  $region20: #{disk_down_forward.1} parent=0 // pred_region
    _
  $region21: #{disk_down_forward.1} parent=0 // pred_fallthru
    _
  %v20 = vld [vmem:[%s3] sm:$0x1]
  %v21 = vld [vmem:[%s3 + $0x1] sm:$0x1]
  %v22 = vld [vmem:[%s3 + $0x2] sm:$0x1]
  %v23 = vld [vmem:[%s3 + $0x3] sm:$0x1]
  %v24 = vlaneseq
  %v25 = vshrl.u32 %v24, 7
  %v26 = vadd.s32 %v25, 8
  %v27 = vadd.s32 %v25, 16
  %v28 = vadd.s32 %v25, 24
  %vm29 = vcmp.lt.s32.totalorder %v25, 0
  %v30 = vsub.s32 0, %v25
  %v31 = vsel %vm29, %v30, %v25
  %v32 = vshrl.u32 %v31, 4
  %v33 = vand.u32 %v31, 15
  %v34 = vsub.s32 0, %v33
  %v35 = vsel %vm29, %v34, %v33
  %vm36 = vcmp.lt.s32.totalorder %v26, 0
  %v37 = vsub.s32 0, %v26
  %v38 = vsel %vm36, %v37, %v26
  %v39 = vshrl.u32 %v38, 4
  %v40 = vand.u32 %v38, 15
  %v41 = vsub.s32 0, %v40
  %v42 = vsel %vm36, %v41, %v40
  %vm43 = vcmp.lt.s32.totalorder %v27, 0
  %v44 = vsub.s32 0, %v27
  %v45 = vsel %vm43, %v44, %v27
  %v46 = vshrl.u32 %v45, 4
  %v47 = vand.u32 %v45, 15
  %v48 = vsub.s32 0, %v47
  %v49 = vsel %vm43, %v48, %v47
  %vm50 = vcmp.lt.s32.totalorder %v28, 0
  %v51 = vsub.s32 0, %v28
  %v52 = vsel %vm50, %v51, %v28
  %v53 = vshrl.u32 %v52, 4
  %v54 = vand.u32 %v52, 15
  %v55 = vsub.s32 0, %v54
  %v56 = vsel %vm50, %v55, %v54
  %vm57 = vcmp.ne.s32.totalorder %v35, 0
  %vm58 = vcmp.ne.s32.totalorder %v42, 0
  %vm59 = vcmp.ne.s32.totalorder %v49, 0
  %vm60 = vcmp.ne.s32.totalorder %v56, 0
  %vm61 = vcmp.lt.s32.totalorder %v35, 0
  %vm62 = vcmp.lt.s32.totalorder %v42, 0
  %vm63 = vcmp.lt.s32.totalorder %v49, 0
  %vm64 = vcmp.lt.s32.totalorder %v56, 0
  %vm65 = vmand %vm61, %vm57
  %vm66 = vmand %vm62, %vm58
  %vm67 = vmand %vm63, %vm59
  %vm68 = vmand %vm64, %vm60
  %v69 = vadd.s32 %v35, 16
  %v70 = vadd.s32 %v42, 16
  %v71 = vadd.s32 %v49, 16
  %v72 = vadd.s32 %v56, 16
  %v73 = vsel %vm65, %v69, %v35
  %v74 = vsel %vm66, %v70, %v42
  %v75 = vsel %vm67, %v71, %v49
  %v76 = vsel %vm68, %v72, %v56
  %vm77 = vcmp.ne.s32.totalorder %v73, 0
  %vm78 = vcmp.ne.s32.totalorder %v74, 0
  %vm79 = vcmp.ne.s32.totalorder %v75, 0
  %vm80 = vcmp.ne.s32.totalorder %v76, 0
  %vm81 = vcmp.ne.s32.totalorder %v73, 15
  %vm82 = vcmp.ne.s32.totalorder %v74, 15
  %vm83 = vcmp.ne.s32.totalorder %v75, 15
  %vm84 = vcmp.ne.s32.totalorder %v76, 15
  %v85 = vld [vmem:[%s0] sm:$0xff]
  %v86 = vld [vmem:[%s0 + $0x8] sm:$0xff]
  %v87 = vld [vmem:[%s0 + $0x10] sm:$0xff]
  %v88 = vld [vmem:[%s0 + $0x18] sm:$0xff]
  %v89 = vld [vmem:[%s1] sm:$0xff]
  %v90 = vld [vmem:[%s1 + $0x8] sm:$0xff]
  %v91 = vld [vmem:[%s1 + $0x10] sm:$0xff]
  %v92 = vld [vmem:[%s1 + $0x18] sm:$0xff]
  %v93 = vld [vmem:[%s1 + $0x20] sm:$0xff]
  %v94 = vld [vmem:[%s1 + $0x28] sm:$0xff]
  %v95 = vld [vmem:[%s1 + $0x30] sm:$0xff]
  %v96 = vld [vmem:[%s1 + $0x38] sm:$0xff]
  %v97 = vld [vmem:[%s1 + $0x40] sm:$0xff]
  %v98 = vld [vmem:[%s1 + $0x48] sm:$0xff]
  %v99 = vld [vmem:[%s1 + $0x50] sm:$0xff]
  %v100 = vld [vmem:[%s1 + $0x58] sm:$0xff]
  %v101 = vld [vmem:[%s1 + $0x60] sm:$0xff]
  %v102 = vld [vmem:[%s1 + $0x68] sm:$0xff]
  %v103 = vld [vmem:[%s1 + $0x70] sm:$0xff]
  %v104 = vld [vmem:[%s1 + $0x78] sm:$0xff]
  %v105 = vld [vmem:[%s1 + $0x80] sm:$0xff]
  %v106 = vld [vmem:[%s1 + $0x88] sm:$0xff]
  %v107 = vld [vmem:[%s1 + $0x90] sm:$0xff]
  %v108 = vld [vmem:[%s1 + $0x98] sm:$0xff]
  %v109 = vld [vmem:[%s1 + $0xa0] sm:$0xff]
  %v110 = vld [vmem:[%s1 + $0xa8] sm:$0xff]
  %v111 = vld [vmem:[%s1 + $0xb0] sm:$0xff]
  %v112 = vld [vmem:[%s1 + $0xb8] sm:$0xff]
  %vm113 = vcmask 523264
  %v115 = vsel %vm113, %v85, 0
  %v118 = vsel %vm113, %v86, 0
  %v121 = vsel %vm113, %v87, 0
  %v124 = vsel %vm113, %v88, 0
  %126 = vmatprep.subr.mxu0 0.0
  %127 = vmatpush1.msra.mxu0 0.0
  %128 = vmatprep.subr.mxu0 0.0
  %129 = vmatpush1.msra.mxu0 0.0
  %130 = vmatprep.subr.mxu0 0.0
  %131 = vmatpush1.msra.mxu0 0.0
  %132 = vmatprep.subr.mxu0 0.0
  %133 = vmatpush1.msra.mxu0 0.0
  %134 = vmatprep.subr.mxu0 0.0
  %135 = vmatpush1.msra.mxu0 0.0
  %136 = vmatprep.subr.mxu0 0.0
  %137 = vmatpush1.msra.mxu0 0.0
  %138 = vmatprep.subr.mxu0 0.0
  %139 = vmatpush1.msra.mxu0 0.0
  %140 = vmatprep.subr.mxu0 0.0
  %141 = vmatpush1.msra.mxu0 0.0
  %142 = vmatprep.subr.mxu0 %v111
  %143 = vmatpush1.msra.mxu0 %v110
  %144 = vmatprep.subr.mxu0 %v108
  %145 = vmatpush1.msra.mxu0 %v107
  %146 = vmatprep.subr.mxu0 %v105
  %147 = vmatpush1.msra.mxu0 %v104
  %148 = vmatprep.subr.mxu0 %v102
  %149 = vmatpush1.msra.mxu0 %v101
  %150 = vmatprep.subr.mxu0 %v99
  %151 = vmatpush1.msra.mxu0 %v98
  %152 = vmatprep.subr.mxu0 %v96
  %153 = vmatpush1.msra.mxu0 %v95
  %154 = vmatprep.subr.mxu0 %v93
  %155 = vmatpush1.msra.mxu0 %v92
  %156 = vmatprep.subr.mxu0 %v90
  %157 = vmatpush1.msra.mxu0 %v89
  %158 = vmatprep.subr.mxu0 0.0
  %159 = vmatpush2.msra.mxu0 0.0
  %160 = vmatprep.subr.mxu0 0.0
  %161 = vmatpush2.msra.mxu0 0.0
  %162 = vmatprep.subr.mxu0 0.0
  %163 = vmatpush2.msra.mxu0 0.0
  %164 = vmatprep.subr.mxu0 0.0
  %165 = vmatpush2.msra.mxu0 0.0
  %166 = vmatprep.subr.mxu0 0.0
  %167 = vmatpush2.msra.mxu0 0.0
  %168 = vmatprep.subr.mxu0 0.0
  %169 = vmatpush2.msra.mxu0 0.0
  %170 = vmatprep.subr.mxu0 0.0
  %171 = vmatpush2.msra.mxu0 0.0
  %172 = vmatprep.subr.mxu0 0.0
  %173 = vmatpush2.msra.mxu0 0.0
  %174 = vmatprep.subr.mxu0 0.0
  %175 = vmatpush2.msra.mxu0 0.0
  %176 = vmatprep.subr.mxu0 0.0
  %177 = vmatpush2.msra.mxu0 0.0
  %178 = vmatprep.subr.mxu0 0.0
  %179 = vmatpush2.msra.mxu0 0.0
  %180 = vmatprep.subr.mxu0 0.0
  %181 = vmatpush2.msra.mxu0 0.0
  %182 = vmatprep.subr.mxu0 0.0
  %183 = vmatpush2.msra.mxu0 0.0
  %184 = vmatprep.subr.mxu0 0.0
  %185 = vmatpush2.msra.mxu0 0.0
  %186 = vmatprep.subr.mxu0 0.0
  %187 = vmatpush2.msra.mxu0 0.0
  %188 = vmatprep.subr.mxu0 0.0
  %189 = vmatpush2.msra.mxu0 0.0
  %190 = vmatprep.mubr.f32.mxu0 0.0
  %191 = vmatmul.mubr.f32.gmra.mxu0 %v115
  %v192 = vpop.f32.mrf.mxu0
  %v193 = vadd.f32 0.0, %v192
  %v194 = vpop.f32.mrf.mxu0
  %v195 = vadd.f32 0.0, %v194
  %196 = vmatprep.mubr.f32.mxu0 0.0
  %197 = vmatmul.mubr.f32.gmra.mxu0 %v118
  %v198 = vpop.f32.mrf.mxu0
  %v199 = vadd.f32 0.0, %v198
  %v200 = vpop.f32.mrf.mxu0
  %v201 = vadd.f32 0.0, %v200
  %202 = vmatprep.mubr.f32.mxu0 0.0
  %203 = vmatmul.mubr.f32.gmra.mxu0 %v121
  %v204 = vpop.f32.mrf.mxu0
  %v205 = vadd.f32 0.0, %v204
  %v206 = vpop.f32.mrf.mxu0
  %v207 = vadd.f32 0.0, %v206
  %208 = vmatprep.mubr.f32.mxu0 0.0
  %209 = vmatmul.mubr.f32.gmra.mxu0 %v124
  %v210 = vpop.f32.mrf.mxu0
  %v211 = vadd.f32 0.0, %v210
  %v212 = vpop.f32.mrf.mxu0
  %v213 = vadd.f32 0.0, %v212
  %214 = vdwg.mxu0
  %215 = vmatprep.subr.mxu0 0.0
  %216 = vmatpush1.msra.mxu0 0.0
  %217 = vmatprep.subr.mxu0 0.0
  %218 = vmatpush1.msra.mxu0 0.0
  %219 = vmatprep.subr.mxu0 0.0
  %220 = vmatpush1.msra.mxu0 0.0
  %221 = vmatprep.subr.mxu0 0.0
  %222 = vmatpush1.msra.mxu0 0.0
  %223 = vmatprep.subr.mxu0 0.0
  %224 = vmatpush1.msra.mxu0 0.0
  %225 = vmatprep.subr.mxu0 0.0
  %226 = vmatpush1.msra.mxu0 0.0
  %227 = vmatprep.subr.mxu0 0.0
  %228 = vmatpush1.msra.mxu0 0.0
  %229 = vmatprep.subr.mxu0 0.0
  %230 = vmatpush1.msra.mxu0 0.0
  %231 = vmatprep.subr.mxu0 0.0
  %232 = vmatpush1.msra.mxu0 %v112
  %233 = vmatprep.subr.mxu0 0.0
  %234 = vmatpush1.msra.mxu0 %v109
  %235 = vmatprep.subr.mxu0 0.0
  %236 = vmatpush1.msra.mxu0 %v106
  %237 = vmatprep.subr.mxu0 0.0
  %238 = vmatpush1.msra.mxu0 %v103
  %239 = vmatprep.subr.mxu0 0.0
  %240 = vmatpush1.msra.mxu0 %v100
  %241 = vmatprep.subr.mxu0 0.0
  %242 = vmatpush1.msra.mxu0 %v97
  %243 = vmatprep.subr.mxu0 0.0
  %244 = vmatpush1.msra.mxu0 %v94
  %245 = vmatprep.subr.mxu0 0.0
  %246 = vmatpush1.msra.mxu0 %v91
  %247 = vmatprep.subr.mxu0 0.0
  %248 = vmatpush2.msra.mxu0 0.0
  %249 = vmatprep.subr.mxu0 0.0
  %250 = vmatpush2.msra.mxu0 0.0
  %251 = vmatprep.subr.mxu0 0.0
  %252 = vmatpush2.msra.mxu0 0.0
  %253 = vmatprep.subr.mxu0 0.0
  %254 = vmatpush2.msra.mxu0 0.0
  %255 = vmatprep.subr.mxu0 0.0
  %256 = vmatpush2.msra.mxu0 0.0
  %257 = vmatprep.subr.mxu0 0.0
  %258 = vmatpush2.msra.mxu0 0.0
  %259 = vmatprep.subr.mxu0 0.0
  %260 = vmatpush2.msra.mxu0 0.0
  %261 = vmatprep.subr.mxu0 0.0
  %262 = vmatpush2.msra.mxu0 0.0
  %263 = vmatprep.subr.mxu0 0.0
  %264 = vmatpush2.msra.mxu0 0.0
  %265 = vmatprep.subr.mxu0 0.0
  %266 = vmatpush2.msra.mxu0 0.0
  %267 = vmatprep.subr.mxu0 0.0
  %268 = vmatpush2.msra.mxu0 0.0
  %269 = vmatprep.subr.mxu0 0.0
  %270 = vmatpush2.msra.mxu0 0.0
  %271 = vmatprep.subr.mxu0 0.0
  %272 = vmatpush2.msra.mxu0 0.0
  %273 = vmatprep.subr.mxu0 0.0
  %274 = vmatpush2.msra.mxu0 0.0
  %275 = vmatprep.subr.mxu0 0.0
  %276 = vmatpush2.msra.mxu0 0.0
  %277 = vmatprep.subr.mxu0 0.0
  %278 = vmatpush2.msra.mxu0 0.0
  %279 = vmatprep.mubr.f32.mxu0 0.0
  %280 = vmatmul.mubr.f32.gmra.mxu0 %v115
  %v281 = vpop.f32.mrf.mxu0
  %v282 = vadd.f32 0.0, %v281
  %v283 = vpop.f32.mrf.mxu0
  %284 = vmatprep.mubr.f32.mxu0 0.0
  %285 = vmatmul.mubr.f32.gmra.mxu0 %v118
  %v286 = vpop.f32.mrf.mxu0
  %v287 = vadd.f32 0.0, %v286
  %v288 = vpop.f32.mrf.mxu0
  %289 = vmatprep.mubr.f32.mxu0 0.0
  %290 = vmatmul.mubr.f32.gmra.mxu0 %v121
  %v291 = vpop.f32.mrf.mxu0
  %v292 = vadd.f32 0.0, %v291
  %v293 = vpop.f32.mrf.mxu0
  %294 = vmatprep.mubr.f32.mxu0 0.0
  %295 = vmatmul.mubr.f32.gmra.mxu0 %v124
  %v296 = vpop.f32.mrf.mxu0
  %v297 = vadd.f32 0.0, %v296
  %v298 = vpop.f32.mrf.mxu0
  %299 = vdwg.mxu0
  %v300 = vrot.slane %v193, 7
  %v301 = vrot.slane %v199, 7
  %v302 = vrot.slane %v205, 7
  %v303 = vrot.slane %v211, 7
  %vm304 = vcmp.lt.s32.totalorder %v25, 1
  %v305 = vsel %vm304, %v302, %v303
  %v306 = vsel %vm304, %v301, %v302
  %v307 = vsel %vm304, %v300, %v301
  %v308 = vsel %vm304, %v303, %v300
  %v309 = vsel %vm77, %v308, 0.0
  %v310 = vsel %vm78, %v307, 0.0
  %v311 = vsel %vm79, %v306, 0.0
  %v312 = vsel %vm80, %v305, 0.0
  %v313 = vrot.slane %v282, 1
  %v314 = vrot.slane %v287, 1
  %v315 = vrot.slane %v292, 1
  %v316 = vrot.slane %v297, 1
  %vm317 = vcmp.lt.s32.totalorder %v25, 7
  %v318 = vsel %vm317, %v315, %v316
  %v319 = vsel %vm317, %v314, %v315
  %v320 = vsel %vm317, %v313, %v314
  %v321 = vsel %vm317, %v316, %v313
  %v322 = vsel %vm81, %v320, 0.0
  %v323 = vsel %vm82, %v319, 0.0
  %v324 = vsel %vm83, %v318, 0.0
  %v325 = vsel %vm84, %v321, 0.0
  %v326 = vadd.f32 %v195, %v309
  %v327 = vadd.f32 %v201, %v310
  %v328 = vadd.f32 %v207, %v311
  %v329 = vadd.f32 %v213, %v312
  %v330 = vadd.f32 %v326, %v322
  %v331 = vadd.f32 %v327, %v323
  %v332 = vadd.f32 %v328, %v324
  %v333 = vadd.f32 %v329, %v325
  %v334 = vlaneseq
  %v335 = vshrl.u32 %v334, 7
  %v336 = vsub.s32 0, %v335
  %v337 = vrot.slane %v20, %v336
  %v338 = vadd.f32 %v330, %v337
  %v339 = vadd.f32 %v331, %v337
  %v340 = vadd.f32 %v332, %v337
  %v341 = vadd.f32 %v333, %v337
  %v342 = vadd.f32 %v338, %v339
  %v343 = vadd.f32 %v342, %v340
  %v344 = vadd.f32 %v343, %v341
  %v345 = vrot.slane %v344, 4
  %v346 = vadd.f32 %v344, %v345
  %v347 = vrot.slane %v346, 2
  %v348 = vadd.f32 %v346, %v347
  %v349 = vrot.slane %v348, 1
  %v350 = vadd.f32 %v348, %v349
  %351 = vrot.lane.b32.xlu0 %v350, 64
  %v352 = vpop.permute.xlu0 %351
  %v353 = vadd.f32 %v350, %v352
  %354 = vrot.lane.b32.xlu0 %v353, 32
  %v355 = vpop.permute.xlu0 %354
  %v356 = vadd.f32 %v353, %v355
  %357 = vrot.lane.b32.xlu0 %v356, 16
  %v358 = vpop.permute.xlu0 %357
  %v359 = vadd.f32 %v356, %v358
  %360 = vrot.lane.b32.xlu0 %v359, 8
  %v361 = vpop.permute.xlu0 %360
  %v362 = vadd.f32 %v359, %v361
  %v363 = vmul.f32 %v362, 0.001953125
  %v364 = vmul.f32 %v338, %v338
  %v365 = vmul.f32 %v339, %v339
  %v366 = vmul.f32 %v340, %v340
  %v367 = vmul.f32 %v341, %v341
  %v368 = vadd.f32 %v364, %v365
  %v369 = vadd.f32 %v368, %v366
  %v370 = vadd.f32 %v369, %v367
  %v371 = vrot.slane %v370, 4
  %v372 = vadd.f32 %v370, %v371
  %v373 = vrot.slane %v372, 2
  %v374 = vadd.f32 %v372, %v373
  %v375 = vrot.slane %v374, 1
  %v376 = vadd.f32 %v374, %v375
  %377 = vrot.lane.b32.xlu0 %v376, 64
  %v378 = vpop.permute.xlu0 %377
  %v379 = vadd.f32 %v376, %v378
  %380 = vrot.lane.b32.xlu0 %v379, 32
  %v381 = vpop.permute.xlu0 %380
  %v382 = vadd.f32 %v379, %v381
  %383 = vrot.lane.b32.xlu0 %v382, 16
  %v384 = vpop.permute.xlu0 %383
  %v385 = vadd.f32 %v382, %v384
  %386 = vrot.lane.b32.xlu0 %v385, 8
  %v387 = vpop.permute.xlu0 %386
  %v388 = vadd.f32 %v385, %v387
  %v389 = vmul.f32 %v388, 0.001953125
  %v390 = vmul.f32 %v363, %v363
  %v391 = vsub.f32 %v389, %v390
  %v392 = vmax.f32 %v391, 0.0
  %v393 = vadd.f32 %v392, 1e-05
  %v394 = vrsqrt.pop %v393
  %v395 = vmul.f32 %v22, %v394
  %v396 = vmul.f32 %v363, %v395
  %v397 = vsub.f32 %v23, %v396
  %v398 = vlaneseq
  %v399 = vshrl.u32 %v398, 7
  %v400 = vsub.s32 0, %v399
  %v401 = vrot.slane %v395, %v400
  %v402 = vmul.f32 %v338, %v401
  %v403 = vmul.f32 %v339, %v401
  %v404 = vmul.f32 %v340, %v401
  %v405 = vmul.f32 %v341, %v401
  %v406 = vlaneseq
  %v407 = vshrl.u32 %v406, 7
  %v408 = vsub.s32 0, %v407
  %v409 = vrot.slane %v397, %v408
  %v410 = vadd.f32 %v402, %v409
  %v411 = vadd.f32 %v403, %v409
  %v412 = vadd.f32 %v404, %v409
  %v413 = vadd.f32 %v405, %v409
  %v414 = vmax.f32 %v410, 0.0
  %v415 = vmax.f32 %v411, 0.0
  %v416 = vmax.f32 %v412, 0.0
  %v417 = vmax.f32 %v413, 0.0
  %v418 = vld [vmem:[%s2] sm:$0xff]
  %v419 = vld [vmem:[%s2 + $0x8] sm:$0xff]
  %v420 = vld [vmem:[%s2 + $0x10] sm:$0xff]
  %v421 = vld [vmem:[%s2 + $0x18] sm:$0xff]
  %v422 = vld [vmem:[%s2 + $0x20] sm:$0xff]
  %v423 = vld [vmem:[%s2 + $0x28] sm:$0xff]
  %v424 = vld [vmem:[%s2 + $0x30] sm:$0xff]
  %v425 = vld [vmem:[%s2 + $0x38] sm:$0xff]
  %v426 = vld [vmem:[%s2 + $0x40] sm:$0xff]
  %v427 = vld [vmem:[%s2 + $0x48] sm:$0xff]
  %v428 = vld [vmem:[%s2 + $0x50] sm:$0xff]
  %v429 = vld [vmem:[%s2 + $0x58] sm:$0xff]
  %v430 = vld [vmem:[%s2 + $0x60] sm:$0xff]
  %v431 = vld [vmem:[%s2 + $0x68] sm:$0xff]
  %v432 = vld [vmem:[%s2 + $0x70] sm:$0xff]
  %v433 = vld [vmem:[%s2 + $0x78] sm:$0xff]
  %v434 = vld [vmem:[%s2 + $0x80] sm:$0xff]
  %v435 = vld [vmem:[%s2 + $0x88] sm:$0xff]
  %v436 = vld [vmem:[%s2 + $0x90] sm:$0xff]
  %v437 = vld [vmem:[%s2 + $0x98] sm:$0xff]
  %v438 = vld [vmem:[%s2 + $0xa0] sm:$0xff]
  %v439 = vld [vmem:[%s2 + $0xa8] sm:$0xff]
  %v440 = vld [vmem:[%s2 + $0xb0] sm:$0xff]
  %v441 = vld [vmem:[%s2 + $0xb8] sm:$0xff]
  %v442 = vld [vmem:[%s2 + $0xc0] sm:$0xff]
  %v443 = vld [vmem:[%s2 + $0xc8] sm:$0xff]
  %v444 = vld [vmem:[%s2 + $0xd0] sm:$0xff]
  %v445 = vld [vmem:[%s2 + $0xd8] sm:$0xff]
  %v446 = vld [vmem:[%s2 + $0xe0] sm:$0xff]
  %v447 = vld [vmem:[%s2 + $0xe8] sm:$0xff]
  %v448 = vld [vmem:[%s2 + $0xf0] sm:$0xff]
  %v449 = vld [vmem:[%s2 + $0xf8] sm:$0xff]
  %v450 = vld [vmem:[%s2 + $0x100] sm:$0xff]
  %v451 = vld [vmem:[%s2 + $0x108] sm:$0xff]
  %v452 = vld [vmem:[%s2 + $0x110] sm:$0xff]
  %v453 = vld [vmem:[%s2 + $0x118] sm:$0xff]
  %v454 = vld [vmem:[%s2 + $0x120] sm:$0xff]
  %v455 = vld [vmem:[%s2 + $0x128] sm:$0xff]
  %v456 = vld [vmem:[%s2 + $0x130] sm:$0xff]
  %v457 = vld [vmem:[%s2 + $0x138] sm:$0xff]
  %v458 = vld [vmem:[%s2 + $0x140] sm:$0xff]
  %v459 = vld [vmem:[%s2 + $0x148] sm:$0xff]
  %v460 = vld [vmem:[%s2 + $0x150] sm:$0xff]
  %v461 = vld [vmem:[%s2 + $0x158] sm:$0xff]
  %v462 = vld [vmem:[%s2 + $0x160] sm:$0xff]
  %v463 = vld [vmem:[%s2 + $0x168] sm:$0xff]
  %v464 = vld [vmem:[%s2 + $0x170] sm:$0xff]
  %v465 = vld [vmem:[%s2 + $0x178] sm:$0xff]
  %466 = vmatprep.subr.mxu0 %v464
  %467 = vmatpush1.msra.mxu0 %v463
  %468 = vmatprep.subr.mxu0 %v461
  %469 = vmatpush1.msra.mxu0 %v460
  %470 = vmatprep.subr.mxu0 %v458
  %471 = vmatpush1.msra.mxu0 %v457
  %472 = vmatprep.subr.mxu0 %v455
  %473 = vmatpush1.msra.mxu0 %v454
  %474 = vmatprep.subr.mxu0 %v452
  %475 = vmatpush1.msra.mxu0 %v451
  %476 = vmatprep.subr.mxu0 %v449
  %477 = vmatpush1.msra.mxu0 %v448
  %478 = vmatprep.subr.mxu0 %v446
  %479 = vmatpush1.msra.mxu0 %v445
  %480 = vmatprep.subr.mxu0 %v443
  %481 = vmatpush1.msra.mxu0 %v442
  %482 = vmatprep.subr.mxu0 %v440
  %483 = vmatpush1.msra.mxu0 %v439
  %484 = vmatprep.subr.mxu0 %v437
  %485 = vmatpush1.msra.mxu0 %v436
  %486 = vmatprep.subr.mxu0 %v434
  %487 = vmatpush1.msra.mxu0 %v433
  %488 = vmatprep.subr.mxu0 %v431
  %489 = vmatpush1.msra.mxu0 %v430
  %490 = vmatprep.subr.mxu0 %v428
  %491 = vmatpush1.msra.mxu0 %v427
  %492 = vmatprep.subr.mxu0 %v425
  %493 = vmatpush1.msra.mxu0 %v424
  %494 = vmatprep.subr.mxu0 %v422
  %495 = vmatpush1.msra.mxu0 %v421
  %496 = vmatprep.subr.mxu0 %v419
  %497 = vmatpush1.msra.mxu0 %v418
  %498 = vmatprep.subr.mxu0 0.0
  %499 = vmatpush2.msra.mxu0 0.0
  %500 = vmatprep.subr.mxu0 0.0
  %501 = vmatpush2.msra.mxu0 0.0
  %502 = vmatprep.subr.mxu0 0.0
  %503 = vmatpush2.msra.mxu0 0.0
  %504 = vmatprep.subr.mxu0 0.0
  %505 = vmatpush2.msra.mxu0 0.0
  %506 = vmatprep.subr.mxu0 0.0
  %507 = vmatpush2.msra.mxu0 0.0
  %508 = vmatprep.subr.mxu0 0.0
  %509 = vmatpush2.msra.mxu0 0.0
  %510 = vmatprep.subr.mxu0 0.0
  %511 = vmatpush2.msra.mxu0 0.0
  %512 = vmatprep.subr.mxu0 0.0
  %513 = vmatpush2.msra.mxu0 0.0
  %514 = vmatprep.subr.mxu0 0.0
  %515 = vmatpush2.msra.mxu0 0.0
  %516 = vmatprep.subr.mxu0 0.0
  %517 = vmatpush2.msra.mxu0 0.0
  %518 = vmatprep.subr.mxu0 0.0
  %519 = vmatpush2.msra.mxu0 0.0
  %520 = vmatprep.subr.mxu0 0.0
  %521 = vmatpush2.msra.mxu0 0.0
  %522 = vmatprep.subr.mxu0 0.0
  %523 = vmatpush2.msra.mxu0 0.0
  %524 = vmatprep.subr.mxu0 0.0
  %525 = vmatpush2.msra.mxu0 0.0
  %526 = vmatprep.subr.mxu0 0.0
  %527 = vmatpush2.msra.mxu0 0.0
  %528 = vmatprep.subr.mxu0 0.0
  %529 = vmatpush2.msra.mxu0 0.0
  %530 = vmatprep.mubr.f32.mxu0 0.0
  %531 = vmatmul.mubr.f32.gmra.mxu0 %v414
  %v532 = vpop.f32.mrf.mxu0
  %v533 = vadd.f32 0.0, %v532
  %v534 = vpop.f32.mrf.mxu0
  %v535 = vadd.f32 0.0, %v534
  %536 = vmatprep.mubr.f32.mxu0 0.0
  %537 = vmatmul.mubr.f32.gmra.mxu0 %v415
  %v538 = vpop.f32.mrf.mxu0
  %v539 = vadd.f32 0.0, %v538
  %v540 = vpop.f32.mrf.mxu0
  %v541 = vadd.f32 0.0, %v540
  %542 = vmatprep.mubr.f32.mxu0 0.0
  %543 = vmatmul.mubr.f32.gmra.mxu0 %v416
  %v544 = vpop.f32.mrf.mxu0
  %v545 = vadd.f32 0.0, %v544
  %v546 = vpop.f32.mrf.mxu0
  %v547 = vadd.f32 0.0, %v546
  %548 = vmatprep.mubr.f32.mxu0 0.0
  %549 = vmatmul.mubr.f32.gmra.mxu0 %v417
  %v550 = vpop.f32.mrf.mxu0
  %v551 = vadd.f32 0.0, %v550
  %v552 = vpop.f32.mrf.mxu0
  %v553 = vadd.f32 0.0, %v552
  %554 = vdwg.mxu0
  %555 = vmatprep.subr.mxu0 0.0
  %556 = vmatpush1.msra.mxu0 %v465
  %557 = vmatprep.subr.mxu0 0.0
  %558 = vmatpush1.msra.mxu0 %v462
  %559 = vmatprep.subr.mxu0 0.0
  %560 = vmatpush1.msra.mxu0 %v459
  %561 = vmatprep.subr.mxu0 0.0
  %562 = vmatpush1.msra.mxu0 %v456
  %563 = vmatprep.subr.mxu0 0.0
  %564 = vmatpush1.msra.mxu0 %v453
  %565 = vmatprep.subr.mxu0 0.0
  %566 = vmatpush1.msra.mxu0 %v450
  %567 = vmatprep.subr.mxu0 0.0
  %568 = vmatpush1.msra.mxu0 %v447
  %569 = vmatprep.subr.mxu0 0.0
  %570 = vmatpush1.msra.mxu0 %v444
  %571 = vmatprep.subr.mxu0 0.0
  %572 = vmatpush1.msra.mxu0 %v441
  %573 = vmatprep.subr.mxu0 0.0
  %574 = vmatpush1.msra.mxu0 %v438
  %575 = vmatprep.subr.mxu0 0.0
  %576 = vmatpush1.msra.mxu0 %v435
  %577 = vmatprep.subr.mxu0 0.0
  %578 = vmatpush1.msra.mxu0 %v432
  %579 = vmatprep.subr.mxu0 0.0
  %580 = vmatpush1.msra.mxu0 %v429
  %581 = vmatprep.subr.mxu0 0.0
  %582 = vmatpush1.msra.mxu0 %v426
  %583 = vmatprep.subr.mxu0 0.0
  %584 = vmatpush1.msra.mxu0 %v423
  %585 = vmatprep.subr.mxu0 0.0
  %586 = vmatpush1.msra.mxu0 %v420
  %587 = vmatprep.subr.mxu0 0.0
  %588 = vmatpush2.msra.mxu0 0.0
  %589 = vmatprep.subr.mxu0 0.0
  %590 = vmatpush2.msra.mxu0 0.0
  %591 = vmatprep.subr.mxu0 0.0
  %592 = vmatpush2.msra.mxu0 0.0
  %593 = vmatprep.subr.mxu0 0.0
  %594 = vmatpush2.msra.mxu0 0.0
  %595 = vmatprep.subr.mxu0 0.0
  %596 = vmatpush2.msra.mxu0 0.0
  %597 = vmatprep.subr.mxu0 0.0
  %598 = vmatpush2.msra.mxu0 0.0
  %599 = vmatprep.subr.mxu0 0.0
  %600 = vmatpush2.msra.mxu0 0.0
  %601 = vmatprep.subr.mxu0 0.0
  %602 = vmatpush2.msra.mxu0 0.0
  %603 = vmatprep.subr.mxu0 0.0
  %604 = vmatpush2.msra.mxu0 0.0
  %605 = vmatprep.subr.mxu0 0.0
  %606 = vmatpush2.msra.mxu0 0.0
  %607 = vmatprep.subr.mxu0 0.0
  %608 = vmatpush2.msra.mxu0 0.0
  %609 = vmatprep.subr.mxu0 0.0
  %610 = vmatpush2.msra.mxu0 0.0
  %611 = vmatprep.subr.mxu0 0.0
  %612 = vmatpush2.msra.mxu0 0.0
  %613 = vmatprep.subr.mxu0 0.0
  %614 = vmatpush2.msra.mxu0 0.0
  %615 = vmatprep.subr.mxu0 0.0
  %616 = vmatpush2.msra.mxu0 0.0
  %617 = vmatprep.subr.mxu0 0.0
  %618 = vmatpush2.msra.mxu0 0.0
  %619 = vmatprep.mubr.f32.mxu0 0.0
  %620 = vmatmul.mubr.f32.gmra.mxu0 %v414
  %v621 = vpop.f32.mrf.mxu0
  %v622 = vadd.f32 0.0, %v621
  %v623 = vpop.f32.mrf.mxu0
  %624 = vmatprep.mubr.f32.mxu0 0.0
  %625 = vmatmul.mubr.f32.gmra.mxu0 %v415
  %v626 = vpop.f32.mrf.mxu0
  %v627 = vadd.f32 0.0, %v626
  %v628 = vpop.f32.mrf.mxu0
  %629 = vmatprep.mubr.f32.mxu0 0.0
  %630 = vmatmul.mubr.f32.gmra.mxu0 %v416
  %v631 = vpop.f32.mrf.mxu0
  %v632 = vadd.f32 0.0, %v631
  %v633 = vpop.f32.mrf.mxu0
  %634 = vmatprep.mubr.f32.mxu0 0.0
  %635 = vmatmul.mubr.f32.gmra.mxu0 %v417
  %v636 = vpop.f32.mrf.mxu0
  %v637 = vadd.f32 0.0, %v636
  %v638 = vpop.f32.mrf.mxu0
  %639 = vdwg.mxu0
  %v640 = vrot.slane %v533, 7
  %v641 = vrot.slane %v539, 7
  %v642 = vrot.slane %v545, 7
  %v643 = vrot.slane %v551, 7
  %v644 = vsel %vm304, %v642, %v643
  %v645 = vsel %vm304, %v641, %v642
  %v646 = vsel %vm304, %v640, %v641
  %v647 = vsel %vm304, %v643, %v640
  %v648 = vsel %vm77, %v647, 0.0
  %v649 = vsel %vm78, %v646, 0.0
  %v650 = vsel %vm79, %v645, 0.0
  %v651 = vsel %vm80, %v644, 0.0
  %v652 = vrot.slane %v622, 1
  %v653 = vrot.slane %v627, 1
  %v654 = vrot.slane %v632, 1
  %v655 = vrot.slane %v637, 1
  %v656 = vsel %vm317, %v654, %v655
  %v657 = vsel %vm317, %v653, %v654
  %v658 = vsel %vm317, %v652, %v653
  %v659 = vsel %vm317, %v655, %v652
  %v660 = vsel %vm81, %v658, 0.0
  %v661 = vsel %vm82, %v657, 0.0
  %v662 = vsel %vm83, %v656, 0.0
  %v663 = vsel %vm84, %v659, 0.0
  %v664 = vadd.f32 %v535, %v648
  %v665 = vadd.f32 %v541, %v649
  %v666 = vadd.f32 %v547, %v650
  %v667 = vadd.f32 %v553, %v651
  %v668 = vadd.f32 %v664, %v660
  %v669 = vadd.f32 %v665, %v661
  %v670 = vadd.f32 %v666, %v662
  %v671 = vadd.f32 %v667, %v663
  %v672 = vlaneseq
  %v673 = vshrl.u32 %v672, 7
  %v674 = vsub.s32 0, %v673
  %v675 = vrot.slane %v21, %v674
  %v676 = vadd.f32 %v668, %v675
  %v677 = vadd.f32 %v669, %v675
  %v678 = vadd.f32 %v670, %v675
  %v679 = vadd.f32 %v671, %v675
  %v680 = vadd.f32 %v676, %v677
  %v681 = vadd.f32 %v680, %v678
  %v682 = vadd.f32 %v681, %v679
  %v683 = vrot.slane %v682, 4
  %v684 = vadd.f32 %v682, %v683
  %v685 = vrot.slane %v684, 2
  %v686 = vadd.f32 %v684, %v685
  %v687 = vrot.slane %v686, 1
  %v688 = vadd.f32 %v686, %v687
  %689 = vrot.lane.b32.xlu0 %v688, 64
  %v690 = vpop.permute.xlu0 %689
  %v691 = vadd.f32 %v688, %v690
  %692 = vrot.lane.b32.xlu0 %v691, 32
  %v693 = vpop.permute.xlu0 %692
  %v694 = vadd.f32 %v691, %v693
  %695 = vrot.lane.b32.xlu0 %v694, 16
  %v696 = vpop.permute.xlu0 %695
  %v697 = vadd.f32 %v694, %v696
  %698 = vrot.lane.b32.xlu0 %v697, 8
  %v699 = vpop.permute.xlu0 %698
  %v700 = vadd.f32 %v697, %v699
  %v701 = vmul.f32 %v700, 0.001953125
  %v702 = vmul.f32 %v676, %v676
  %v703 = vmul.f32 %v677, %v677
  %v704 = vmul.f32 %v678, %v678
  %v705 = vmul.f32 %v679, %v679
  %v706 = vadd.f32 %v702, %v703
  %v707 = vadd.f32 %v706, %v704
  %v708 = vadd.f32 %v707, %v705
  %v709 = vrot.slane %v708, 4
  %v710 = vadd.f32 %v708, %v709
  %v711 = vrot.slane %v710, 2
  %v712 = vadd.f32 %v710, %v711
  %v713 = vrot.slane %v712, 1
  %v714 = vadd.f32 %v712, %v713
  %715 = vrot.lane.b32.xlu0 %v714, 64
  %v716 = vpop.permute.xlu0 %715
  %v717 = vadd.f32 %v714, %v716
  %718 = vrot.lane.b32.xlu0 %v717, 32
  %v719 = vpop.permute.xlu0 %718
  %v720 = vadd.f32 %v717, %v719
  %721 = vrot.lane.b32.xlu0 %v720, 16
  %v722 = vpop.permute.xlu0 %721
  %v723 = vadd.f32 %v720, %v722
  %724 = vrot.lane.b32.xlu0 %v723, 8
  %v725 = vpop.permute.xlu0 %724
  %v726 = vadd.f32 %v723, %v725
  %v727 = vmul.f32 %v726, 0.001953125
  %v728 = vmul.f32 %v701, %v701
  %v729 = vsub.f32 %v727, %v728
  %v730 = vmax.f32 %v729, 0.0
  %v731 = vadd.f32 %v730, 1e-05
  %v732 = vrsqrt.pop %v731
  %v733 = vmul.f32 %v22, %v732
  %v734 = vmul.f32 %v701, %v733
  %v735 = vsub.f32 %v23, %v734
  %v736 = vlaneseq
  %v737 = vshrl.u32 %v736, 7
  %v738 = vsub.s32 0, %v737
  %v739 = vrot.slane %v733, %v738
  %v740 = vmul.f32 %v676, %v739
  %v741 = vmul.f32 %v677, %v739
  %v742 = vmul.f32 %v678, %v739
  %v743 = vmul.f32 %v679, %v739
  %v744 = vlaneseq
  %v745 = vshrl.u32 %v744, 7
  %v746 = vsub.s32 0, %v745
  %v747 = vrot.slane %v735, %v746
  %v748 = vadd.f32 %v740, %v747
  %v749 = vadd.f32 %v741, %v747
  %v750 = vadd.f32 %v742, %v747
  %v751 = vadd.f32 %v743, %v747
  %v752 = vmax.f32 %v748, 0.0
  %v753 = vmax.f32 %v749, 0.0
  %v754 = vmax.f32 %v750, 0.0
  %v755 = vmax.f32 %v751, 0.0
  %v760 = vcombine.high %v752, %v752
  %v762 = vunpack.c.l.s4 1983009808
  %v763 = vunpack.c.0.s8 %v762
  %v764 = vlaneseq
  %v765 = vshrl.u32 %v764, 7
  %v766 = vsub.s32 %v763, %v765
  %v767 = vrot.slane %v752, %v766
  %v769 = vunpack.c.l.s4 1983009808
  %v770 = vunpack.c.0.s8 %v769
  %v771 = vlaneseq
  %v772 = vshrl.u32 %v771, 7
  %v773 = vsub.s32 %v770, %v772
  %v774 = vrot.slane %v760, %v773
  %v775 = vcombine.high %v767, %v767
  %v776 = vcombine.high %v774, %v774
  %v777 = vcombine.high %v753, %v753
  %v779 = vunpack.c.l.s4 1983009808
  %v780 = vunpack.c.0.s8 %v779
  %v781 = vlaneseq
  %v782 = vshrl.u32 %v781, 7
  %v783 = vsub.s32 %v780, %v782
  %v784 = vrot.slane %v753, %v783
  %v786 = vunpack.c.l.s4 1983009808
  %v787 = vunpack.c.0.s8 %v786
  %v788 = vlaneseq
  %v789 = vshrl.u32 %v788, 7
  %v790 = vsub.s32 %v787, %v789
  %v791 = vrot.slane %v777, %v790
  %v792 = vcombine.high %v784, %v784
  %v793 = vcombine.high %v791, %v791
  %v794 = vcombine.high %v754, %v754
  %v796 = vunpack.c.l.s4 1983009808
  %v797 = vunpack.c.0.s8 %v796
  %v798 = vlaneseq
  %v799 = vshrl.u32 %v798, 7
  %v800 = vsub.s32 %v797, %v799
  %v801 = vrot.slane %v754, %v800
  %v803 = vunpack.c.l.s4 1983009808
  %v804 = vunpack.c.0.s8 %v803
  %v805 = vlaneseq
  %v806 = vshrl.u32 %v805, 7
  %v807 = vsub.s32 %v804, %v806
  %v808 = vrot.slane %v794, %v807
  %v809 = vcombine.high %v801, %v801
  %v810 = vcombine.high %v808, %v808
  %v811 = vcombine.high %v755, %v755
  %v813 = vunpack.c.l.s4 1983009808
  %v814 = vunpack.c.0.s8 %v813
  %v815 = vlaneseq
  %v816 = vshrl.u32 %v815, 7
  %v817 = vsub.s32 %v814, %v816
  %v818 = vrot.slane %v755, %v817
  %v820 = vunpack.c.l.s4 1983009808
  %v821 = vunpack.c.0.s8 %v820
  %v822 = vlaneseq
  %v823 = vshrl.u32 %v822, 7
  %v824 = vsub.s32 %v821, %v823
  %v825 = vrot.slane %v811, %v824
  %v826 = vcombine.high %v818, %v818
  %v827 = vcombine.high %v825, %v825
  %v844 = vrot.slane %v767, 7
  %v845 = vrot.slane %v844, 2
  %v846 = vrot.slane %v775, 7
  %v847 = vrot.slane %v846, 2
  %v848 = vrot.slane %v774, 7
  %v849 = vrot.slane %v848, 2
  %v850 = vrot.slane %v776, 7
  %v851 = vrot.slane %v850, 2
  %v852 = vrot.slane %v784, 7
  %v853 = vrot.slane %v852, 2
  %v854 = vrot.slane %v792, 7
  %v855 = vrot.slane %v854, 2
  %v856 = vrot.slane %v791, 7
  %v857 = vrot.slane %v856, 2
  %v858 = vrot.slane %v793, 7
  %v859 = vrot.slane %v858, 2
  %v860 = vrot.slane %v801, 7
  %v861 = vrot.slane %v860, 2
  %v862 = vrot.slane %v809, 7
  %v863 = vrot.slane %v862, 2
  %v864 = vrot.slane %v808, 7
  %v865 = vrot.slane %v864, 2
  %v866 = vrot.slane %v810, 7
  %v867 = vrot.slane %v866, 2
  %v868 = vrot.slane %v818, 7
  %v869 = vrot.slane %v868, 2
  %v870 = vrot.slane %v826, 7
  %v871 = vrot.slane %v870, 2
  %v872 = vrot.slane %v825, 7
  %v873 = vrot.slane %v872, 2
  %v874 = vrot.slane %v827, 7
  %v875 = vrot.slane %v874, 2
  %v892 = vmax.f32 %v767, %v845
  %v893 = vmax.f32 %v775, %v847
  %v894 = vmax.f32 %v774, %v849
  %v895 = vmax.f32 %v776, %v851
  %v896 = vmax.f32 %v784, %v853
  %v897 = vmax.f32 %v792, %v855
  %v898 = vmax.f32 %v791, %v857
  %v899 = vmax.f32 %v793, %v859
  %v900 = vmax.f32 %v801, %v861
  %v901 = vmax.f32 %v809, %v863
  %v902 = vmax.f32 %v808, %v865
  %v903 = vmax.f32 %v810, %v867
  %v904 = vmax.f32 %v818, %v869
  %v905 = vmax.f32 %v826, %v871
  %v906 = vmax.f32 %v825, %v873
  %v907 = vmax.f32 %v827, %v875
  %v908 = vld [vmem:[%s4] sm:$0xff]
  %v909 = vld [vmem:[%s4 + $0x8] sm:$0xff]
  %v910 = vld [vmem:[%s4 + $0x10] sm:$0xff]
  %v911 = vld [vmem:[%s4 + $0x18] sm:$0xff]
  %v912 = vld [vmem:[%s4 + $0x20] sm:$0xff]
  %v913 = vld [vmem:[%s4 + $0x28] sm:$0xff]
  %v914 = vld [vmem:[%s4 + $0x30] sm:$0xff]
  %v915 = vld [vmem:[%s4 + $0x38] sm:$0xff]
  %v916 = vld [vmem:[%s4 + $0x40] sm:$0xff]
  %v917 = vld [vmem:[%s4 + $0x48] sm:$0xff]
  %v918 = vld [vmem:[%s4 + $0x50] sm:$0xff]
  %v919 = vld [vmem:[%s4 + $0x58] sm:$0xff]
  %v920 = vld [vmem:[%s4 + $0x60] sm:$0xff]
  %v921 = vld [vmem:[%s4 + $0x68] sm:$0xff]
  %v922 = vld [vmem:[%s4 + $0x70] sm:$0xff]
  %v923 = vld [vmem:[%s4 + $0x78] sm:$0xff]
  %v940 = vlaneseq
  %v941 = vshrl.u32 %v940, 7
  %v942 = vsub.s32 0, %v941
  %v943 = vrot.slane %v892, %v942
  %v944 = vlaneseq
  %v945 = vshrl.u32 %v944, 7
  %v946 = vsub.s32 0, %v945
  %v947 = vrot.slane %v893, %v946
  %v948 = vlaneseq
  %v949 = vshrl.u32 %v948, 7
  %v950 = vsub.s32 0, %v949
  %v951 = vrot.slane %v894, %v950
  %v952 = vlaneseq
  %v953 = vshrl.u32 %v952, 7
  %v954 = vsub.s32 0, %v953
  %v955 = vrot.slane %v895, %v954
  %v956 = vlaneseq
  %v957 = vshrl.u32 %v956, 7
  %v958 = vsub.s32 0, %v957
  %v959 = vrot.slane %v896, %v958
  %v960 = vlaneseq
  %v961 = vshrl.u32 %v960, 7
  %v962 = vsub.s32 0, %v961
  %v963 = vrot.slane %v897, %v962
  %v964 = vlaneseq
  %v965 = vshrl.u32 %v964, 7
  %v966 = vsub.s32 0, %v965
  %v967 = vrot.slane %v898, %v966
  %v968 = vlaneseq
  %v969 = vshrl.u32 %v968, 7
  %v970 = vsub.s32 0, %v969
  %v971 = vrot.slane %v899, %v970
  %v972 = vlaneseq
  %v973 = vshrl.u32 %v972, 7
  %v974 = vsub.s32 0, %v973
  %v975 = vrot.slane %v900, %v974
  %v976 = vlaneseq
  %v977 = vshrl.u32 %v976, 7
  %v978 = vsub.s32 0, %v977
  %v979 = vrot.slane %v901, %v978
  %v980 = vlaneseq
  %v981 = vshrl.u32 %v980, 7
  %v982 = vsub.s32 0, %v981
  %v983 = vrot.slane %v902, %v982
  %v984 = vlaneseq
  %v985 = vshrl.u32 %v984, 7
  %v986 = vsub.s32 0, %v985
  %v987 = vrot.slane %v903, %v986
  %v988 = vlaneseq
  %v989 = vshrl.u32 %v988, 7
  %v990 = vsub.s32 0, %v989
  %v991 = vrot.slane %v904, %v990
  %v992 = vlaneseq
  %v993 = vshrl.u32 %v992, 7
  %v994 = vsub.s32 0, %v993
  %v995 = vrot.slane %v905, %v994
  %v996 = vlaneseq
  %v997 = vshrl.u32 %v996, 7
  %v998 = vsub.s32 0, %v997
  %v999 = vrot.slane %v906, %v998
  %v1000 = vlaneseq
  %v1001 = vshrl.u32 %v1000, 7
  %v1002 = vsub.s32 0, %v1001
  %v1003 = vrot.slane %v907, %v1002
  %vm1004 = vcmask 1041409
  %v1005 = vsel %vm1004, %v947, %v943
  %vm1006 = vcmask 1042434
  %v1007 = vsel %vm1006, %v951, %v1005
  %vm1008 = vcmask 1043459
  %v1009 = vsel %vm1008, %v955, %v1007
  %vm1010 = vcmask 1044484
  %v1011 = vsel %vm1010, %v959, %v1009
  %vm1012 = vcmask 1045509
  %v1013 = vsel %vm1012, %v963, %v1011
  %vm1014 = vcmask 1046534
  %v1015 = vsel %vm1014, %v967, %v1013
  %vm1016 = vcmask 1047559
  %v1017 = vsel %vm1016, %v971, %v1015
  %v1018 = vsel %vm1004, %v979, %v975
  %v1019 = vsel %vm1006, %v983, %v1018
  %v1020 = vsel %vm1008, %v987, %v1019
  %v1021 = vsel %vm1010, %v991, %v1020
  %v1022 = vsel %vm1012, %v995, %v1021
  %v1023 = vsel %vm1014, %v999, %v1022
  %v1024 = vsel %vm1016, %v1003, %v1023
  %1027 = vmatprep.subr.mxu0 0.0
  %1028 = vmatpush1.msra.mxu0 %v923
  %1029 = vmatprep.subr.mxu0 0.0
  %1030 = vmatpush1.msra.mxu0 %v922
  %1031 = vmatprep.subr.mxu0 0.0
  %1032 = vmatpush1.msra.mxu0 %v921
  %1033 = vmatprep.subr.mxu0 0.0
  %1034 = vmatpush1.msra.mxu0 %v920
  %1035 = vmatprep.subr.mxu0 0.0
  %1036 = vmatpush1.msra.mxu0 %v919
  %1037 = vmatprep.subr.mxu0 0.0
  %1038 = vmatpush1.msra.mxu0 %v918
  %1039 = vmatprep.subr.mxu0 0.0
  %1040 = vmatpush1.msra.mxu0 %v917
  %1041 = vmatprep.subr.mxu0 0.0
  %1042 = vmatpush1.msra.mxu0 %v916
  %1043 = vmatprep.subr.mxu0 0.0
  %1044 = vmatpush1.msra.mxu0 %v915
  %1045 = vmatprep.subr.mxu0 0.0
  %1046 = vmatpush1.msra.mxu0 %v914
  %1047 = vmatprep.subr.mxu0 0.0
  %1048 = vmatpush1.msra.mxu0 %v913
  %1049 = vmatprep.subr.mxu0 0.0
  %1050 = vmatpush1.msra.mxu0 %v912
  %1051 = vmatprep.subr.mxu0 0.0
  %1052 = vmatpush1.msra.mxu0 %v911
  %1053 = vmatprep.subr.mxu0 0.0
  %1054 = vmatpush1.msra.mxu0 %v910
  %1055 = vmatprep.subr.mxu0 0.0
  %1056 = vmatpush1.msra.mxu0 %v909
  %1057 = vmatprep.subr.mxu0 0.0
  %1058 = vmatpush1.msra.mxu0 %v908
  %1059 = vmatprep.subr.mxu0 0.0
  %1060 = vmatpush2.msra.mxu0 0.0
  %1061 = vmatprep.subr.mxu0 0.0
  %1062 = vmatpush2.msra.mxu0 0.0
  %1063 = vmatprep.subr.mxu0 0.0
  %1064 = vmatpush2.msra.mxu0 0.0
  %1065 = vmatprep.subr.mxu0 0.0
  %1066 = vmatpush2.msra.mxu0 0.0
  %1067 = vmatprep.subr.mxu0 0.0
  %1068 = vmatpush2.msra.mxu0 0.0
  %1069 = vmatprep.subr.mxu0 0.0
  %1070 = vmatpush2.msra.mxu0 0.0
  %1071 = vmatprep.subr.mxu0 0.0
  %1072 = vmatpush2.msra.mxu0 0.0
  %1073 = vmatprep.subr.mxu0 0.0
  %1074 = vmatpush2.msra.mxu0 0.0
  %1075 = vmatprep.subr.mxu0 0.0
  %1076 = vmatpush2.msra.mxu0 0.0
  %1077 = vmatprep.subr.mxu0 0.0
  %1078 = vmatpush2.msra.mxu0 0.0
  %1079 = vmatprep.subr.mxu0 0.0
  %1080 = vmatpush2.msra.mxu0 0.0
  %1081 = vmatprep.subr.mxu0 0.0
  %1082 = vmatpush2.msra.mxu0 0.0
  %1083 = vmatprep.subr.mxu0 0.0
  %1084 = vmatpush2.msra.mxu0 0.0
  %1085 = vmatprep.subr.mxu0 0.0
  %1086 = vmatpush2.msra.mxu0 0.0
  %1087 = vmatprep.subr.mxu0 0.0
  %1088 = vmatpush2.msra.mxu0 0.0
  %1089 = vmatprep.subr.mxu0 0.0
  %1090 = vmatpush2.msra.mxu0 0.0
  %1091 = vmatprep.mubr.f32.mxu0 0.0
  %1092 = vmatmul.mubr.f32.gmra.mxu0 %v1017
  %v1093 = vpop.f32.mrf.mxu0
  %v1094 = vadd.f32 0.0, %v1093
  %v1095 = vpop.f32.mrf.mxu0
  %1096 = vmatprep.mubr.f32.mxu0 0.0
  %1097 = vmatmul.mubr.f32.gmra.mxu0 %v1024
  %v1098 = vpop.f32.mrf.mxu0
  %v1099 = vadd.f32 0.0, %v1098
  %v1100 = vpop.f32.mrf.mxu0
  %1101 = vdwg.mxu0
  %s1102 = scalar_lea.vmem %s4, 128
  %v1103 = vld [vmem:[%s1102] sm:$0xff]
  %v1104 = vld [vmem:[%s1102 + $0x8] sm:$0xff]
  %v1105 = vld [vmem:[%s1102 + $0x10] sm:$0xff]
  %v1106 = vld [vmem:[%s1102 + $0x18] sm:$0xff]
  %v1107 = vld [vmem:[%s1102 + $0x20] sm:$0xff]
  %v1108 = vld [vmem:[%s1102 + $0x28] sm:$0xff]
  %v1109 = vld [vmem:[%s1102 + $0x30] sm:$0xff]
  %v1110 = vld [vmem:[%s1102 + $0x38] sm:$0xff]
  %v1111 = vld [vmem:[%s1102 + $0x40] sm:$0xff]
  %v1112 = vld [vmem:[%s1102 + $0x48] sm:$0xff]
  %v1113 = vld [vmem:[%s1102 + $0x50] sm:$0xff]
  %v1114 = vld [vmem:[%s1102 + $0x58] sm:$0xff]
  %v1115 = vld [vmem:[%s1102 + $0x60] sm:$0xff]
  %v1116 = vld [vmem:[%s1102 + $0x68] sm:$0xff]
  %v1117 = vld [vmem:[%s1102 + $0x70] sm:$0xff]
  %v1118 = vld [vmem:[%s1102 + $0x78] sm:$0xff]
  %1119 = vmatprep.subr.mxu0 0.0
  %1120 = vmatpush1.msra.mxu0 %v1118
  %1121 = vmatprep.subr.mxu0 0.0
  %1122 = vmatpush1.msra.mxu0 %v1117
  %1123 = vmatprep.subr.mxu0 0.0
  %1124 = vmatpush1.msra.mxu0 %v1116
  %1125 = vmatprep.subr.mxu0 0.0
  %1126 = vmatpush1.msra.mxu0 %v1115
  %1127 = vmatprep.subr.mxu0 0.0
  %1128 = vmatpush1.msra.mxu0 %v1114
  %1129 = vmatprep.subr.mxu0 0.0
  %1130 = vmatpush1.msra.mxu0 %v1113
  %1131 = vmatprep.subr.mxu0 0.0
  %1132 = vmatpush1.msra.mxu0 %v1112
  %1133 = vmatprep.subr.mxu0 0.0
  %1134 = vmatpush1.msra.mxu0 %v1111
  %1135 = vmatprep.subr.mxu0 0.0
  %1136 = vmatpush1.msra.mxu0 %v1110
  %1137 = vmatprep.subr.mxu0 0.0
  %1138 = vmatpush1.msra.mxu0 %v1109
  %1139 = vmatprep.subr.mxu0 0.0
  %1140 = vmatpush1.msra.mxu0 %v1108
  %1141 = vmatprep.subr.mxu0 0.0
  %1142 = vmatpush1.msra.mxu0 %v1107
  %1143 = vmatprep.subr.mxu0 0.0
  %1144 = vmatpush1.msra.mxu0 %v1106
  %1145 = vmatprep.subr.mxu0 0.0
  %1146 = vmatpush1.msra.mxu0 %v1105
  %1147 = vmatprep.subr.mxu0 0.0
  %1148 = vmatpush1.msra.mxu0 %v1104
  %1149 = vmatprep.subr.mxu0 0.0
  %1150 = vmatpush1.msra.mxu0 %v1103
  %1151 = vmatprep.subr.mxu0 0.0
  %1152 = vmatpush2.msra.mxu0 0.0
  %1153 = vmatprep.subr.mxu0 0.0
  %1154 = vmatpush2.msra.mxu0 0.0
  %1155 = vmatprep.subr.mxu0 0.0
  %1156 = vmatpush2.msra.mxu0 0.0
  %1157 = vmatprep.subr.mxu0 0.0
  %1158 = vmatpush2.msra.mxu0 0.0
  %1159 = vmatprep.subr.mxu0 0.0
  %1160 = vmatpush2.msra.mxu0 0.0
  %1161 = vmatprep.subr.mxu0 0.0
  %1162 = vmatpush2.msra.mxu0 0.0
  %1163 = vmatprep.subr.mxu0 0.0
  %1164 = vmatpush2.msra.mxu0 0.0
  %1165 = vmatprep.subr.mxu0 0.0
  %1166 = vmatpush2.msra.mxu0 0.0
  %1167 = vmatprep.subr.mxu0 0.0
  %1168 = vmatpush2.msra.mxu0 0.0
  %1169 = vmatprep.subr.mxu0 0.0
  %1170 = vmatpush2.msra.mxu0 0.0
  %1171 = vmatprep.subr.mxu0 0.0
  %1172 = vmatpush2.msra.mxu0 0.0
  %1173 = vmatprep.subr.mxu0 0.0
  %1174 = vmatpush2.msra.mxu0 0.0
  %1175 = vmatprep.subr.mxu0 0.0
  %1176 = vmatpush2.msra.mxu0 0.0
  %1177 = vmatprep.subr.mxu0 0.0
  %1178 = vmatpush2.msra.mxu0 0.0
  %1179 = vmatprep.subr.mxu0 0.0
  %1180 = vmatpush2.msra.mxu0 0.0
  %1181 = vmatprep.subr.mxu0 0.0
  %1182 = vmatpush2.msra.mxu0 0.0
  %1183 = vmatprep.mubr.f32.mxu0 0.0
  %1184 = vmatmul.mubr.f32.gmra.mxu0 %v1017
  %v1185 = vpop.f32.mrf.mxu0
  %v1186 = vadd.f32 0.0, %v1185
  %v1187 = vpop.f32.mrf.mxu0
  %1188 = vmatprep.mubr.f32.mxu0 0.0
  %1189 = vmatmul.mubr.f32.gmra.mxu0 %v1024
  %v1190 = vpop.f32.mrf.mxu0
  %v1191 = vadd.f32 0.0, %v1190
  %v1192 = vpop.f32.mrf.mxu0
  %1193 = vdwg.mxu0
  %v1194 = vmax.f32 %v1094, %v1186
  %v1195 = vmax.f32 %v1099, %v1191
  %1196 = vst.msk [vmem:[%s5] sm:$0xff] %vm113, %v1194
  %1197 = vst.msk [vmem:[%s5 + $0x8] sm:$0xff] %vm113, %v1195
  // Predicated region
  $region22: #{disk_down_forward.1} parent=0 // pred_check
    _
  $region23: #{disk_down_forward.1} parent=0 // pred_check_branch
    %1199 = sbr.rel (0) target = $region25
  $region24: #{disk_down_forward.1} parent=0 // pred_region
    _
  $region25: #{disk_down_forward.1} parent=0 // pred_fallthru
    _
  // Predicated region
  $region26: #{disk_down_forward.1} parent=0 // pred_check
    _
  $region27: #{disk_down_forward.1} parent=0 // pred_check_branch
    %1201 = sbr.rel (0) target = $region29
  $region28: #{disk_down_forward.1} parent=0 // pred_region
    _
  $region29: #{disk_down_forward.1} parent=0 // pred_fallthru
    _

</llo_original>
